<compile_context>
chip_gen: v7x
topology: tpu7x:2x2x1
jax: 0.10.0
libtpu: 0.0.40
codegen_flags: <defaults>
</compile_context>

<pallas_src>
import functools

import jax
import jax.numpy as jnp
from jax.experimental import pallas as pl
from jax.experimental.pallas import tpu as pltpu


def _rga_spatial_kernel(x_ref,
                        tpg_w_ref, tpg_b_ref,
                        ggw_in_ref, ggw_out_ref, gg_b_ref,
                        w1g_ref, w1gg_ref, w1_b_ref,
                        w2_wt_ref, w2_b_ref,
                        out_ref, *, nb, hwp):
    """One grid step: nb batch samples, out = sigmoid(W_spatial(ys)) * x.

    Layout: x/out are (C, nb*hwp) slabs — channels on sublanes, each sample's
    flattened spatial positions in a contiguous lane block of width hwp
    (a multiple of 128, so all slices/stores are lane-aligned).
    """
    x = x_ref[...]                                        # (C, L), compute dtype

    # --- theta / phi / gx 1x1 convs (conv+BN folded): ONE wide MXU matmul.
    tpg = jnp.dot(tpg_w_ref[...], x, preferred_element_type=jnp.float32)
    tpg = jnp.maximum(tpg + tpg_b_ref[...], 0.0)          # (3ic, L), f32
    ic = tpg.shape[0] // 3
    tp = tpg[:2 * ic, :]                                  # theta‖phi (sublane-aligned)
    gx = tpg[2 * ic:, :]
    g_mean = jnp.mean(gx, axis=0, keepdims=True)          # (1, L)

    # --- Relation features WITHOUT materializing the (HW, HW) Gram matrix:
    #   Gs = theta^T @ phi                               (never formed)
    #   gg = gg_w_in @ Gs^T + gg_w_out @ Gs
    #      = (gg_w_in @ phi^T) @ theta + (gg_w_out @ theta^T) @ phi
    #      = [a_in | a_out] @ [theta; phi]               (one K=2ic matmul)
    # Short static unroll over the nb samples of this tile; per-sample lane
    # slices start at multiples of hwp (k*128) so they are free views.
    ggw_in = ggw_in_ref[...]                              # (isp, hwp), f32
    ggw_out = ggw_out_ref[...]
    gg_cols = []
    for s in range(nb):
        tp_s = tp[:, s * hwp:(s + 1) * hwp]               # (2ic, hwp)
        theta_s = tp_s[:ic, :]
        phi_s = tp_s[ic:, :]
        a_in = jnp.einsum('sh,ch->sc', ggw_in, phi_s,
                          preferred_element_type=jnp.float32)     # (isp, ic)
        a_out = jnp.einsum('sh,ch->sc', ggw_out, theta_s,
                           preferred_element_type=jnp.float32)    # (isp, ic)
        a = jnp.concatenate([a_in, a_out], axis=-1)       # (isp, 2ic), f32
        gg_cols.append(jnp.dot(a, tp_s, preferred_element_type=jnp.float32))
    gg = gg_cols[0] if nb == 1 else jnp.concatenate(gg_cols, axis=-1)  # (isp, L)
    gg = jnp.maximum(gg + gg_b_ref[...], 0.0)

    # --- W_spatial: [conv+BN+ReLU] then [conv+BN] on cat(g_mean, gg).  The
    #     first conv weight was pre-split on the host (column 0 -> g_mean).
    z1 = jnp.dot(w1gg_ref[...], gg, preferred_element_type=jnp.float32)  # (mid, L)
    z1 = jnp.maximum(z1 + w1g_ref[...] * g_mean + w1_b_ref[...], 0.0)
    z2 = jnp.sum(w2_wt_ref[...] * z1, axis=0, keepdims=True) + w2_b_ref[...]

    # Gate: x is re-read only here, so no full-size f32 copy of x stays live
    # across the matmuls above.
    out_ref[...] = (jax.nn.sigmoid(z2)
                    * x_ref[...].astype(jnp.float32)).astype(out_ref.dtype)


def _pick_block_n(n, per_sample_tile_bytes, budget_bytes, min_grid_steps):
    """Largest divisor of n whose x/out tiles fit the VMEM budget while keeping
    at least `min_grid_steps` grid steps (2 feeds both v7x TensorCores under
    dimension_semantics=('parallel',); use 1 on single-TC v5e/v6e)."""
    min_steps = min(min_grid_steps, n)
    nb = 1
    for d in range(1, n + 1):
        if (n % d == 0 and (n // d) >= min_steps
                and d * per_sample_tile_bytes <= budget_bytes):
            nb = d
    return nb


def rga_spatial_forward(x_nchw, params, *, block_n=None,
                        compute_dtype=jnp.float32,
                        min_grid_steps=2,
                        tile_vmem_budget_bytes=24 << 20):
    """Pallas forward of the spatial RGA branch.

    compute_dtype=bf16 -> x and the fused conv weight travel / hit the MXU in
    bf16 (f32 accumulation); every later stage and the output stay f32.
    compute_dtype=f32 -> all-f32 path (same math as the reference, modulo the
    documented Gram-matrix reassociation of the summation order).
    """
    N, C, H, W = x_nchw.shape
    HW = H * W
    HWp = -(-HW // 128) * 128          # pad spatial to lane-dense multiple of 128
    pad = HWp - HW
    out_dtype = x_nchw.dtype

    (theta_w, theta_b, phi_w, phi_b, gx_w, gx_b,
     gg_w, gg_b, w1_w, w1_b, w2_w, w2_b) = params

    # Host-side weight packing / pre-splitting.  Only the large first-matmul
    # operands (x, tpg_w) use compute_dtype; the small relation / W weights
    # stay f32 so the bf16 path quantizes a single MXU stage.
    tpg_w = jnp.concatenate([theta_w, phi_w, gx_w], axis=0).astype(compute_dtype)
    tpg_b = jnp.concatenate([theta_b, phi_b, gx_b], axis=0).astype(jnp.float32)
    ggw_in = gg_w[:, :HW].astype(jnp.float32)    # multiplies Gs_in  (= Gs^T)
    ggw_out = gg_w[:, HW:].astype(jnp.float32)   # multiplies Gs_out (= Gs)
    if pad:
        zcols = jnp.zeros((gg_w.shape[0], pad), jnp.float32)
        ggw_in = jnp.concatenate([ggw_in, zcols], axis=1)    # zero cols -> padded
        ggw_out = jnp.concatenate([ggw_out, zcols], axis=1)  # positions ignored
    gg_bc = gg_b.astype(jnp.float32)
    w1g = w1_w[:, 0:1].astype(jnp.float32)       # column 0   -> g_mean
    w1gg = w1_w[:, 1:].astype(jnp.float32)       # columns 1: -> gg
    w1_bc = w1_b.astype(jnp.float32)
    w2_wt = w2_w.T.astype(jnp.float32)           # (mid, 1)
    w2_bc = w2_b.astype(jnp.float32)
    weights = (tpg_w, tpg_b, ggw_in, ggw_out, gg_bc,
               w1g, w1gg, w1_bc, w2_wt, w2_bc)

    # x as one (C, N*HWp) slab (single host transpose); zero spatial padding.
    x3 = x_nchw.reshape(N, C, HW)
    if pad:
        x3 = jnp.pad(x3, ((0, 0), (0, 0), (0, pad)))
    x2d = jnp.transpose(x3, (1, 0, 2)).reshape(C, N * HWp).astype(compute_dtype)

    in_b = jnp.dtype(compute_dtype).itemsize
    out_b = jnp.dtype(out_dtype).itemsize
    per_sample_tile = C * HWp * 2 * (in_b + out_b)   # double-buffered in+out x
    if block_n is None:
        nb = _pick_block_n(N, per_sample_tile, tile_vmem_budget_bytes,
                           min_grid_steps)
    else:
        nb = max(d for d in range(1, max(1, min(block_n, N)) + 1) if N % d == 0)
    grid = (N // nb,)

    # Explicit scoped-VMEM limit (v5e's default is only 16 MiB of 128; v7x has
    # 64 MiB physical): x/out tiles + (double-buffered) weights + f32
    # intermediates + 50% slack.  At production C*HW on v7x prefer bf16 or a
    # smaller tile_vmem_budget_bytes; constant-weight specs could additionally
    # be single-buffered via pipeline_mode=pl.Buffered(1).
    ic = tpg_w.shape[0] // 3
    isp = ggw_in.shape[0]
    mid = w1gg.shape[0]
    weight_bytes = sum(int(w.size) * w.dtype.itemsize for w in weights)
    interm_bytes = 4 * nb * HWp * (3 * ic + 2 * isp + 2 * mid + 8)
    est = nb * per_sample_tile + 2 * weight_bytes + interm_bytes
    vmem_limit = int(max(32 << 20, min(est + est // 2 + (2 << 20), 120 << 20)))

    def const_spec(arr):
        return pl.BlockSpec(arr.shape, lambda b: (0, 0))

    x_spec = pl.BlockSpec((C, nb * HWp), lambda b: (0, b))
    aliases = {0: 0} if jnp.dtype(compute_dtype) == jnp.dtype(out_dtype) else {}

    out2d = pl.pallas_call(
        functools.partial(_rga_spatial_kernel, nb=nb, hwp=HWp),
        out_shape=jax.ShapeDtypeStruct((C, N * HWp), out_dtype),
        grid=grid,
        in_specs=[x_spec] + [const_spec(w) for w in weights],
        out_specs=x_spec,
        input_output_aliases=aliases,
        compiler_params=pltpu.CompilerParams(
            dimension_semantics=("parallel",),
            vmem_limit_bytes=vmem_limit),
    )(x2d, *weights)

    out = jnp.transpose(out2d.reshape(C, N, HWp), (1, 0, 2))[:, :, :HW]
    return out.reshape(N, C, H, W)


def _fold_conv_bn(conv_w, gamma, beta, mean, var, eps=1e-5):
    # 1x1 conv (no bias) followed by BatchNorm (inference) == affine matmul.
    scale = gamma / jnp.sqrt(var + eps)
    eff_w = conv_w * scale[:, None]
    eff_b = (beta - mean * scale)[:, None]
    return eff_w.astype(jnp.float32), eff_b.astype(jnp.float32)


def init_rga_spatial_params(key, in_channel, in_spatial,
                            channel_ratio=8, spatial_ratio=8, downchannel_ratio=8):
    ic = in_channel // channel_ratio
    isp = in_spatial // spatial_ratio
    mid = (isp + 1) // downchannel_ratio

    def conv_bn(k, out_c, in_c):
        ks = jax.random.split(k, 5)
        conv_w = 0.1 * jax.random.normal(ks[0], (out_c, in_c), jnp.float32)
        gamma = 1.0 + 0.1 * jax.random.normal(ks[1], (out_c,), jnp.float32)
        beta = 0.1 * jax.random.normal(ks[2], (out_c,), jnp.float32)
        mean = 0.1 * jax.random.normal(ks[3], (out_c,), jnp.float32)
        var = 1.0 + 0.1 * jnp.abs(jax.random.normal(ks[4], (out_c,), jnp.float32))
        return _fold_conv_bn(conv_w, gamma, beta, mean, var)

    keys = jax.random.split(key, 6)
    theta_w, theta_b = conv_bn(keys[0], ic, in_channel)    # theta_spatial
    phi_w, phi_b = conv_bn(keys[1], ic, in_channel)        # phi_spatial
    gx_w, gx_b = conv_bn(keys[2], ic, in_channel)          # gx_spatial
    gg_w, gg_b = conv_bn(keys[3], isp, 2 * in_spatial)     # gg_spatial
    w1_w, w1_b = conv_bn(keys[4], mid, isp + 1)            # W_spatial block 1
    w2_w, w2_b = conv_bn(keys[5], 1, mid)                  # W_spatial block 2 (no ReLU)
    return (theta_w, theta_b, phi_w, phi_b, gx_w, gx_b,
            gg_w, gg_b, w1_w, w1_b, w2_w, w2_b)


def rga_spatial_reference(x_nchw, params):
    """Pure-JAX mirror of the PyTorch spatial forward (explicit Gram matrix),
    used to validate the reassociated Pallas kernel."""
    N, C, H, W = x_nchw.shape
    HW = H * W
    (theta_w, theta_b, phi_w, phi_b, gx_w, gx_b,
     gg_w, gg_b, w1_w, w1_b, w2_w, w2_b) = params
    x = x_nchw.reshape(N, C, HW).astype(jnp.float32)
    relu = lambda v: jnp.maximum(v, 0.0)
    theta = relu(jnp.einsum('oc,ncs->nos', theta_w, x) + theta_b[None])
    phi = relu(jnp.einsum('oc,ncs->nos', phi_w, x) + phi_b[None])
    gs = jnp.einsum('nci,ncj->nij', theta, phi)            # (N, HW, HW)
    gs_in = jnp.swapaxes(gs, 1, 2)
    gs_joint = jnp.concatenate([gs_in, gs], axis=1)        # (N, 2HW, HW)
    gg = relu(jnp.einsum('ok,nks->nos', gg_w, gs_joint) + gg_b[None])
    gx = relu(jnp.einsum('oc,ncs->nos', gx_w, x) + gx_b[None])
    g_mean = jnp.mean(gx, axis=1, keepdims=True)
    ys = jnp.concatenate([g_mean, gg], axis=1)
    z1 = relu(jnp.einsum('ok,nks->nos', w1_w, ys) + w1_b[None])
    z2 = jnp.einsum('ok,nks->nos', w2_w, z1) + w2_b[None]
    out = jax.nn.sigmoid(z2) * x
    return out.reshape(N, C, H, W)


if __name__ == "__main__":
    # RGAModule(in_channel=64, in_spatial=H*W, use_spatial=True, use_channel=False)
    # TODO(synk): channel branch omitted — the reference __init__ uses
    # `elif use_channel`, so with use_spatial=True the channel layers are never
    # built and that path cannot execute.
    key = jax.random.PRNGKey(0)
    k1, k2, k3, k4 = jax.random.split(key, 4)

    # Case 1: lane-dense spatial size (HW = 128), f32 path.
    N, C, H, W = 4, 64, 16, 8
    x = jax.random.normal(k1, (N, C, H, W), jnp.float32)
    params = init_rga_spatial_params(k2, in_channel=C, in_spatial=H * W)
    ref = rga_spatial_reference(x, params)
    out = jax.block_until_ready(rga_spatial_forward(x, params))
    assert out.shape == x.shape and out.dtype == x.dtype
    if not jnp.allclose(out, ref, atol=2e-4, rtol=2e-4):
        raise AssertionError("Pallas kernel (f32, HW=128) mismatch vs reference")

    # Case 2: non-multiple-of-128 spatial (HW = 96 -> padded to 128 in-wrapper,
    # cropped on output).
    N2, C2, H2, W2 = 2, 64, 12, 8
    x2 = jax.random.normal(k3, (N2, C2, H2, W2), jnp.float32)
    params2 = init_rga_spatial_params(k4, in_channel=C2, in_spatial=H2 * W2)
    ref2 = rga_spatial_reference(x2, params2)
    out2 = jax.block_until_ready(rga_spatial_forward(x2, params2))
    if not jnp.allclose(out2, ref2, atol=2e-4, rtol=2e-4):
        raise AssertionError("Pallas kernel (f32, padded HW) mismatch vs reference")

    # Case 3: bf16 x / conv-weight on the MXU (f32 accumulation, f32 output).
    out_bf16 = jax.block_until_ready(
        rga_spatial_forward(x, params, compute_dtype=jnp.bfloat16))
    max_err = float(jnp.max(jnp.abs(out_bf16.astype(jnp.float32) - ref)))
    if not (max_err < 0.3):
        raise AssertionError(
            f"Pallas kernel (bf16) mismatch vs JAX reference: max_err={max_err}")

    print("KERNEL_OK")
</pallas_src>

<mosaic_0001>
module attributes {stable_mosaic.version = 11 : i64} {
  func.func @_rga_spatial_kernel(%arg0: i32, %arg1: memref<64x256xf32, #tpu.memory_space<vmem>>, %arg2: memref<24x64xf32, #tpu.memory_space<vmem>>, %arg3: memref<24x1xf32, #tpu.memory_space<vmem>>, %arg4: memref<16x128xf32, #tpu.memory_space<vmem>>, %arg5: memref<16x128xf32, #tpu.memory_space<vmem>>, %arg6: memref<16x1xf32, #tpu.memory_space<vmem>>, %arg7: memref<2x1xf32, #tpu.memory_space<vmem>>, %arg8: memref<2x16xf32, #tpu.memory_space<vmem>>, %arg9: memref<2x1xf32, #tpu.memory_space<vmem>>, %arg10: memref<2x1xf32, #tpu.memory_space<vmem>>, %arg11: memref<1x1xf32, #tpu.memory_space<vmem>>, %arg12: memref<64x256xf32, #tpu.memory_space<vmem>>) attributes {dimension_semantics = [#tpu.dimension_semantics<parallel>], iteration_bounds = array<i64: 2>, scalar_prefetch = 0 : i64, scratch_operands = 0 : i64, tpu.core_type = #tpu.core_type<tc>, window_params = [{transform_indices = @transform_0, window_bounds = array<i64: 64, 256>}, {pipeline_mode = #tpu.pipeline_mode<synchronous>, transform_indices = @transform_1, window_bounds = array<i64: 24, 64>}, {pipeline_mode = #tpu.pipeline_mode<synchronous>, transform_indices = @transform_2, window_bounds = array<i64: 24, 1>}, {pipeline_mode = #tpu.pipeline_mode<synchronous>, transform_indices = @transform_3, window_bounds = array<i64: 16, 128>}, {pipeline_mode = #tpu.pipeline_mode<synchronous>, transform_indices = @transform_4, window_bounds = array<i64: 16, 128>}, {pipeline_mode = #tpu.pipeline_mode<synchronous>, transform_indices = @transform_5, window_bounds = array<i64: 16, 1>}, {pipeline_mode = #tpu.pipeline_mode<synchronous>, transform_indices = @transform_6, window_bounds = array<i64: 2, 1>}, {pipeline_mode = #tpu.pipeline_mode<synchronous>, transform_indices = @transform_7, window_bounds = array<i64: 2, 16>}, {pipeline_mode = #tpu.pipeline_mode<synchronous>, transform_indices = @transform_8, window_bounds = array<i64: 2, 1>}, {pipeline_mode = #tpu.pipeline_mode<synchronous>, transform_indices = @transform_9, window_bounds = array<i64: 2, 1>}, {pipeline_mode = #tpu.pipeline_mode<synchronous>, transform_indices = @transform_10, window_bounds = array<i64: 1, 1>}, {transform_indices = @transform_11, window_bounds = array<i64: 64, 256>}]} {
    %c0 = arith.constant 0 : index
    %c0_0 = arith.constant 0 : index
    %0 = vector.load %arg1[%c0, %c0_0] : memref<64x256xf32, #tpu.memory_space<vmem>>, vector<64x256xf32>
    %c0_1 = arith.constant 0 : index
    %c0_2 = arith.constant 0 : index
    %1 = vector.load %arg2[%c0_1, %c0_2] : memref<24x64xf32, #tpu.memory_space<vmem>>, vector<24x64xf32>
    %cst = arith.constant dense<0.000000e+00> : vector<24x256xf32>
    %2 = tpu.matmul %1, %0, %cst {dimension_numbers = #tpu.dot_dimension_numbers<[1], [0], [0], [1], [0, 0, 1, 1], [], []>} : vector<24x64xf32>, vector<64x256xf32>, vector<24x256xf32> -> vector<24x256xf32>
    %c0_3 = arith.constant 0 : index
    %c0_4 = arith.constant 0 : index
    %3 = vector.load %arg3[%c0_3, %c0_4] : memref<24x1xf32, #tpu.memory_space<vmem>>, vector<24x1xf32>
    %4 = vector.broadcast %3 : vector<24x1xf32> to vector<24x256xf32>
    %5 = arith.addf %2, %4 : vector<24x256xf32>
    %cst_5 = arith.constant 0.000000e+00 : f32
    %6 = vector.broadcast %cst_5 : f32 to vector<24x256xf32>
    %7 = arith.maximumf %5, %6 : vector<24x256xf32>
    %8 = vector.extract_strided_slice %7 {offsets = [0, 0], sizes = [16, 256], strides = [1, 1]} : vector<24x256xf32> to vector<16x256xf32>
    %9 = vector.extract_strided_slice %7 {offsets = [16, 0], sizes = [8, 256], strides = [1, 1]} : vector<24x256xf32> to vector<8x256xf32>
    %cst_6 = arith.constant dense<0.000000e+00> : vector<256xf32>
    %10 = vector.multi_reduction <add>, %9, %cst_6 [0] : vector<8x256xf32> to vector<256xf32>
    %11 = vector.shape_cast %10 : vector<256xf32> to vector<1x256xf32>
    %cst_7 = arith.constant 8.000000e+00 : f32
    %12 = vector.broadcast %cst_7 : f32 to vector<1x256xf32>
    %13 = arith.divf %11, %12 : vector<1x256xf32>
    %c0_8 = arith.constant 0 : index
    %c0_9 = arith.constant 0 : index
    %14 = vector.load %arg4[%c0_8, %c0_9] : memref<16x128xf32, #tpu.memory_space<vmem>>, vector<16x128xf32>
    %c0_10 = arith.constant 0 : index
    %c0_11 = arith.constant 0 : index
    %15 = vector.load %arg5[%c0_10, %c0_11] : memref<16x128xf32, #tpu.memory_space<vmem>>, vector<16x128xf32>
    %16 = vector.extract_strided_slice %8 {offsets = [0, 0], sizes = [16, 128], strides = [1, 1]} : vector<16x256xf32> to vector<16x128xf32>
    %17 = vector.extract_strided_slice %16 {offsets = [0, 0], sizes = [8, 128], strides = [1, 1]} : vector<16x128xf32> to vector<8x128xf32>
    %18 = vector.extract_strided_slice %16 {offsets = [8, 0], sizes = [8, 128], strides = [1, 1]} : vector<16x128xf32> to vector<8x128xf32>
    "tpu.trace_start"() <{level = 10 : i32, message = "sh,ch->sc"}> : () -> ()
    %cst_12 = arith.constant dense<0.000000e+00> : vector<16x8xf32>
    %19 = tpu.matmul %14, %18, %cst_12 {dimension_numbers = #tpu.dot_dimension_numbers<[1], [1], [0], [0], [0, 0, 1, 0], [], []>} : vector<16x128xf32>, vector<8x128xf32>, vector<16x8xf32> -> vector<16x8xf32>
    %cst_13 = arith.constant dense<0.000000e+00> : vector<16x8xf32>
    %20 = tpu.matmul %15, %17, %cst_13 {dimension_numbers = #tpu.dot_dimension_numbers<[1], [1], [0], [0], [0, 0, 1, 0], [], []>} : vector<16x128xf32>, vector<8x128xf32>, vector<16x8xf32> -> vector<16x8xf32>
    "tpu.trace_stop"() : () -> ()
    %21 = tpu.concatenate %19, %20 in 1 : vector<16x8xf32>, vector<16x8xf32> -> vector<16x16xf32>
    %cst_14 = arith.constant dense<0.000000e+00> : vector<16x128xf32>
    %22 = tpu.matmul %21, %16, %cst_14 {dimension_numbers = #tpu.dot_dimension_numbers<[1], [0], [0], [1], [0, 0, 1, 1], [], []>} : vector<16x16xf32>, vector<16x128xf32>, vector<16x128xf32> -> vector<16x128xf32>
    %23 = vector.extract_strided_slice %8 {offsets = [0, 128], sizes = [16, 128], strides = [1, 1]} : vector<16x256xf32> to vector<16x128xf32>
    %24 = vector.extract_strided_slice %23 {offsets = [0, 0], sizes = [8, 128], strides = [1, 1]} : vector<16x128xf32> to vector<8x128xf32>
    %25 = vector.extract_strided_slice %23 {offsets = [8, 0], sizes = [8, 128], strides = [1, 1]} : vector<16x128xf32> to vector<8x128xf32>
    "tpu.trace_start"() <{level = 10 : i32, message = "sh,ch->sc"}> : () -> ()
    %cst_15 = arith.constant dense<0.000000e+00> : vector<16x8xf32>
    %26 = tpu.matmul %14, %25, %cst_15 {dimension_numbers = #tpu.dot_dimension_numbers<[1], [1], [0], [0], [0, 0, 1, 0], [], []>} : vector<16x128xf32>, vector<8x128xf32>, vector<16x8xf32> -> vector<16x8xf32>
    %cst_16 = arith.constant dense<0.000000e+00> : vector<16x8xf32>
    %27 = tpu.matmul %15, %24, %cst_16 {dimension_numbers = #tpu.dot_dimension_numbers<[1], [1], [0], [0], [0, 0, 1, 0], [], []>} : vector<16x128xf32>, vector<8x128xf32>, vector<16x8xf32> -> vector<16x8xf32>
    "tpu.trace_stop"() : () -> ()
    %28 = tpu.concatenate %26, %27 in 1 : vector<16x8xf32>, vector<16x8xf32> -> vector<16x16xf32>
    %cst_17 = arith.constant dense<0.000000e+00> : vector<16x128xf32>
    %29 = tpu.matmul %28, %23, %cst_17 {dimension_numbers = #tpu.dot_dimension_numbers<[1], [0], [0], [1], [0, 0, 1, 1], [], []>} : vector<16x16xf32>, vector<16x128xf32>, vector<16x128xf32> -> vector<16x128xf32>
    %30 = tpu.concatenate %22, %29 in 1 : vector<16x128xf32>, vector<16x128xf32> -> vector<16x256xf32>
    %c0_18 = arith.constant 0 : index
    %c0_19 = arith.constant 0 : index
    %31 = vector.load %arg6[%c0_18, %c0_19] : memref<16x1xf32, #tpu.memory_space<vmem>>, vector<16x1xf32>
    %32 = vector.broadcast %31 : vector<16x1xf32> to vector<16x256xf32>
    %33 = arith.addf %30, %32 : vector<16x256xf32>
    %cst_20 = arith.constant 0.000000e+00 : f32
    %34 = vector.broadcast %cst_20 : f32 to vector<16x256xf32>
    %35 = arith.maximumf %33, %34 : vector<16x256xf32>
    %c0_21 = arith.constant 0 : index
    %c0_22 = arith.constant 0 : index
    %36 = vector.load %arg8[%c0_21, %c0_22] : memref<2x16xf32, #tpu.memory_space<vmem>>, vector<2x16xf32>
    %cst_23 = arith.constant dense<0.000000e+00> : vector<2x256xf32>
    %37 = tpu.matmul %36, %35, %cst_23 {dimension_numbers = #tpu.dot_dimension_numbers<[1], [0], [0], [1], [0, 0, 1, 1], [], []>} : vector<2x16xf32>, vector<16x256xf32>, vector<2x256xf32> -> vector<2x256xf32>
    %c0_24 = arith.constant 0 : index
    %c0_25 = arith.constant 0 : index
    %38 = vector.load %arg7[%c0_24, %c0_25] : memref<2x1xf32, #tpu.memory_space<vmem>>, vector<2x1xf32>
    %39 = vector.broadcast %38 : vector<2x1xf32> to vector<2x256xf32>
    %40 = vector.broadcast %13 : vector<1x256xf32> to vector<2x256xf32>
    %41 = arith.mulf %39, %40 : vector<2x256xf32>
    %42 = arith.addf %37, %41 : vector<2x256xf32>
    %c0_26 = arith.constant 0 : index
    %c0_27 = arith.constant 0 : index
    %43 = vector.load %arg9[%c0_26, %c0_27] : memref<2x1xf32, #tpu.memory_space<vmem>>, vector<2x1xf32>
    %44 = vector.broadcast %43 : vector<2x1xf32> to vector<2x256xf32>
    %45 = arith.addf %42, %44 : vector<2x256xf32>
    %cst_28 = arith.constant 0.000000e+00 : f32
    %46 = vector.broadcast %cst_28 : f32 to vector<2x256xf32>
    %47 = arith.maximumf %45, %46 : vector<2x256xf32>
    %c0_29 = arith.constant 0 : index
    %c0_30 = arith.constant 0 : index
    %48 = vector.load %arg10[%c0_29, %c0_30] : memref<2x1xf32, #tpu.memory_space<vmem>>, vector<2x1xf32>
    %49 = vector.broadcast %48 : vector<2x1xf32> to vector<2x256xf32>
    %50 = arith.mulf %49, %47 : vector<2x256xf32>
    %cst_31 = arith.constant dense<0.000000e+00> : vector<256xf32>
    %51 = vector.multi_reduction <add>, %50, %cst_31 [0] : vector<2x256xf32> to vector<256xf32>
    %52 = vector.shape_cast %51 : vector<256xf32> to vector<1x256xf32>
    %c0_32 = arith.constant 0 : index
    %c0_33 = arith.constant 0 : index
    %53 = vector.load %arg11[%c0_32, %c0_33] : memref<1x1xf32, #tpu.memory_space<vmem>>, vector<1x1xf32>
    %54 = vector.broadcast %53 : vector<1x1xf32> to vector<1x256xf32>
    %55 = arith.addf %52, %54 : vector<1x256xf32>
    %56 = arith.negf %55 : vector<1x256xf32>
    %57 = math.exp %56 : vector<1x256xf32>
    %cst_34 = arith.constant 1.000000e+00 : f32
    %58 = vector.broadcast %cst_34 : f32 to vector<1x256xf32>
    %59 = arith.addf %58, %57 : vector<1x256xf32>
    %60 = arith.divf %58, %59 : vector<1x256xf32>
    %c0_35 = arith.constant 0 : index
    %c0_36 = arith.constant 0 : index
    %61 = vector.load %arg1[%c0_35, %c0_36] : memref<64x256xf32, #tpu.memory_space<vmem>>, vector<64x256xf32>
    %62 = vector.broadcast %60 : vector<1x256xf32> to vector<64x256xf32>
    %63 = arith.mulf %62, %61 : vector<64x256xf32>
    %c0_37 = arith.constant 0 : index
    %c0_38 = arith.constant 0 : index
    %64 = vector.load %arg12[%c0_37, %c0_38] : memref<64x256xf32, #tpu.memory_space<vmem>>, vector<64x256xf32>
    tpu.vector_store %arg12[%c0_37, %c0_38], %63 {strides = array<i32>} : memref<64x256xf32, #tpu.memory_space<vmem>>, vector<64x256xf32>,
    return
  }
  func.func @transform_0(%arg0: i32) -> (i32, i32) {
    %c0_i32 = arith.constant 0 : i32
    %c0_i32_0 = arith.constant 0 : i32
    return %c0_i32, %arg0 : i32, i32
  }
  func.func @transform_1(%arg0: i32) -> (i32, i32) {
    %c0_i32 = arith.constant 0 : i32
    %c0_i32_0 = arith.constant 0 : i32
    %c0_i32_1 = arith.constant 0 : i32
    return %c0_i32, %c0_i32_0 : i32, i32
  }
  func.func @transform_2(%arg0: i32) -> (i32, i32) {
    %c0_i32 = arith.constant 0 : i32
    %c0_i32_0 = arith.constant 0 : i32
    %c0_i32_1 = arith.constant 0 : i32
    return %c0_i32, %c0_i32_0 : i32, i32
  }
  func.func @transform_3(%arg0: i32) -> (i32, i32) {
    %c0_i32 = arith.constant 0 : i32
    %c0_i32_0 = arith.constant 0 : i32
    %c0_i32_1 = arith.constant 0 : i32
    return %c0_i32, %c0_i32_0 : i32, i32
  }
  func.func @transform_4(%arg0: i32) -> (i32, i32) {
    %c0_i32 = arith.constant 0 : i32
    %c0_i32_0 = arith.constant 0 : i32
    %c0_i32_1 = arith.constant 0 : i32
    return %c0_i32, %c0_i32_0 : i32, i32
  }
  func.func @transform_5(%arg0: i32) -> (i32, i32) {
    %c0_i32 = arith.constant 0 : i32
    %c0_i32_0 = arith.constant 0 : i32
    %c0_i32_1 = arith.constant 0 : i32
    return %c0_i32, %c0_i32_0 : i32, i32
  }
  func.func @transform_6(%arg0: i32) -> (i32, i32) {
    %c0_i32 = arith.constant 0 : i32
    %c0_i32_0 = arith.constant 0 : i32
    %c0_i32_1 = arith.constant 0 : i32
    return %c0_i32, %c0_i32_0 : i32, i32
  }
  func.func @transform_7(%arg0: i32) -> (i32, i32) {
    %c0_i32 = arith.constant 0 : i32
    %c0_i32_0 = arith.constant 0 : i32
    %c0_i32_1 = arith.constant 0 : i32
    return %c0_i32, %c0_i32_0 : i32, i32
  }
  func.func @transform_8(%arg0: i32) -> (i32, i32) {
    %c0_i32 = arith.constant 0 : i32
    %c0_i32_0 = arith.constant 0 : i32
    %c0_i32_1 = arith.constant 0 : i32
    return %c0_i32, %c0_i32_0 : i32, i32
  }
  func.func @transform_9(%arg0: i32) -> (i32, i32) {
    %c0_i32 = arith.constant 0 : i32
    %c0_i32_0 = arith.constant 0 : i32
    %c0_i32_1 = arith.constant 0 : i32
    return %c0_i32, %c0_i32_0 : i32, i32
  }
  func.func @transform_10(%arg0: i32) -> (i32, i32) {
    %c0_i32 = arith.constant 0 : i32
    %c0_i32_0 = arith.constant 0 : i32
    %c0_i32_1 = arith.constant 0 : i32
    return %c0_i32, %c0_i32_0 : i32, i32
  }
  func.func @transform_11(%arg0: i32) -> (i32, i32) {
    %c0_i32 = arith.constant 0 : i32
    %c0_i32_0 = arith.constant 0 : i32
    return %c0_i32, %arg0 : i32, i32
  }
}

</mosaic_0001>

<llo_original>
// kernel: tpu_custom_call.1
$region0: #{tpu_custom_call.1}
  #allocation0 [shape = 'u32[]', space=smem, size = 0x4, offset = 0x4, fixed_abs, tag = 'smem constant byte address 0x4 - core index']
  #allocation1 [shape = 'u32[144,128]{1,0:T(1,128)}', space=vmem, size = 0x12000, scoped, tag = 'internal scratch']
  #allocation2 [shape = 'f32[1,1]{1,0:T(1,128)S(1)}', space=vmem, size = 0x200, scoped, tag = 'scoped memory for tpu_custom_call.1']
  %s0 = inlined_call_operand.hbm [shape: f32[64,512], index: 0, kind: input, shape index: {}, may-alias: {0,11}]
  %s1 = inlined_call_operand.vmem [shape: f32[24,64], index: 1, kind: input, shape index: {}]
  %s2 = inlined_call_operand.vmem [shape: f32[24,1], index: 2, kind: input, shape index: {}]
  %s3 = inlined_call_operand.vmem [shape: f32[16,128], index: 3, kind: input, shape index: {}]
  %s4 = inlined_call_operand.vmem [shape: f32[16,128], index: 4, kind: input, shape index: {}]
  %s5 = inlined_call_operand.vmem [shape: f32[16,1], index: 5, kind: input, shape index: {}]
  %s6 = inlined_call_operand.vmem [shape: f32[2,1], index: 6, kind: input, shape index: {}]
  %s7 = inlined_call_operand.vmem [shape: f32[2,16], index: 7, kind: input, shape index: {}]
  %s8 = inlined_call_operand.vmem [shape: f32[2,1], index: 8, kind: input, shape index: {}]
  %s9 = inlined_call_operand.vmem [shape: f32[2,1], index: 9, kind: input, shape index: {}]
  %s10 = inlined_call_operand.<no memory space> [shape: f32[1,1], index: 10, kind: input, shape index: {}]
  %s11 = inlined_call_operand.hbm [shape: f32[64,512], index: 11, kind: output, shape index: {}, may-alias: {0,11}]
  %s12 = sld [smem:[#allocation0]]
  $region81: #{tpu_custom_call.1} parent=0
    _
  %s14 = ssub.s32 1, %s12
  %s15 = scalar_select 0, %s14, %s12
  %v16 = vstv %s10
  %17 = vst [vmem:[#allocation2] sm:$0x1] %v16
  $region1: #{tpu_custom_call.1} parent=0
    #allocation3 [shape = 'u8[131072]{0}', space=vmem, size = 0x20000, scoped, tag = 'input window, operand 0']
    #allocation4 [shape = 's32[2]{0}', space=sflag, size = 0x8, scoped, tag = 'scoped memory for tpu_custom_call.1']
    #allocation5 [shape = 's32[2]{0}', space=sflag, size = 0x8, scoped, tag = 'scoped memory for tpu_custom_call.1']
    #allocation6 [shape = 'u8[131072]{0}', space=vmem, size = 0x20000, scoped, tag = 'output window, operand 0']
    %18 = vsyncpa [#allocation4], 0
    %s19 = scalar_lea.sflag [#allocation4], 1
    %20 = vsyncpa %s19, 0
    %21 = vsyncpa [#allocation5], 0
    %s22 = scalar_lea.sflag [#allocation5], 1
    %23 = vsyncpa %s22, 0
    loop: start=0, step=1, limit=4
    $region2: #{tpu_custom_call.1} parent=1 // loop_pre_header
      _
    $region3: #{tpu_custom_call.1} parent=1 // loop_header
      %s25 = sphi 0, %s29
      %p26 = scmp.ge.s32.totalorder %s25, 4
      %s35 = sphi 0, %s37
      %s38 = sphi 0, %s35
      %s39 = sphi 0, %s38
      %s55 = sphi 0, %s39
      %s59 = sphi 0, %s59
      %s61 = sphi 0, %s59
      %s62 = sphi 0, %s61
      %s76 = sphi 0, %s62
      %s80 = sphi 0, %s80
      %s82 = sphi 0, %s80
      %s83 = sphi 0, %s82
      %s97 = sphi 0, %s83
      %s101 = sphi 0, %s101
      %s103 = sphi 0, %s101
      %s104 = sphi 0, %s103
      %s118 = sphi 0, %s104
      %s122 = sphi 0, %s122
      %s124 = sphi 0, %s122
      %s125 = sphi 0, %s124
      %s139 = sphi 0, %s125
      %s143 = sphi 0, %s143
      %s145 = sphi 0, %s143
      %s146 = sphi 0, %s145
      %s160 = sphi 0, %s146
      %s164 = sphi 0, %s164
      %s166 = sphi 0, %s164
      %s167 = sphi 0, %s166
      %s181 = sphi 0, %s167
      %s185 = sphi 0, %s185
      %s187 = sphi 0, %s185
      %s188 = sphi 0, %s187
      %s202 = sphi 0, %s188
      %s206 = sphi 0, %s206
      %s208 = sphi 0, %s206
      %s209 = sphi 0, %s208
      %s223 = sphi 0, %s209
      %s227 = sphi 0, %s227
      %s229 = sphi 0, %s227
      %s230 = sphi 0, %s229
      %s244 = sphi 0, %s230
      %s248 = sphi 0, %s248
      %s250 = sphi 0, %s248
      %s251 = sphi 0, %s250
      %s265 = sphi 0, %s251
      %s271 = sphi 0, %s273
      %s274 = sphi 0, %s271
      %s275 = sphi 0, %s274
      %s291 = sphi 0, %s275
    $region4: #{tpu_custom_call.1} parent=1 // loop_header_branch
      %28 = sbr.rel (%p26) target = $region8
    $region5: #{tpu_custom_call.1} parent=1 // loop_body
      %s30 = ssub.s32 %s25, 1
      %s31 = ssub.s32 %s25, 2
      %s32 = sadd.s32 %s25, 1
      %s33 = ssub.s32 %s25, %s32
      %p34 = scmp.eq.s32.totalorder %s33, 0
      %s36 = sadd.s32 %s35, 1
      %s37 = scalar_select %p34, %s35, %s36
      %p40 = pneg %p34
      %p41 = scmp.eq.s32.totalorder %s25, 1
      %p42 = por %p40, %p41
      %p43 = scmp.ne.s32.totalorder %s35, %s38
      %p44 = scmp.eq.s32.totalorder %s25, 0
      %p45 = por %p43, %p44
      %p46 = scmp.ne.s32.totalorder %s35, %s38
      %p47 = scmp.eq.s32.totalorder %s30, 1
      %p48 = por %p46, %p47
      %p49 = scmp.ne.s32.totalorder %s38, %s39
      %p50 = scmp.eq.s32.totalorder %s30, 0
      %p51 = por %p49, %p50
      %p52 = scmp.ne.s32.totalorder %s38, %s39
      %p53 = scmp.eq.s32.totalorder %s31, 1
      %p54 = por %p52, %p53
      %p56 = scmp.ne.s32.totalorder %s39, %s55
      %p57 = scmp.eq.s32.totalorder %s31, 0
      %p58 = por %p56, %p57
      %s60 = sadd.s32 %s59, 1
      %p63 = scmp.eq.s32.totalorder %s25, 1
      %p64 = scmp.ne.s32.totalorder %s59, %s61
      %p65 = scmp.eq.s32.totalorder %s25, 0
      %p66 = por %p64, %p65
      %p67 = scmp.ne.s32.totalorder %s59, %s61
      %p68 = scmp.eq.s32.totalorder %s30, 1
      %p69 = por %p67, %p68
      %p70 = scmp.ne.s32.totalorder %s61, %s62
      %p71 = scmp.eq.s32.totalorder %s30, 0
      %p72 = por %p70, %p71
      %p73 = scmp.ne.s32.totalorder %s61, %s62
      %p74 = scmp.eq.s32.totalorder %s31, 1
      %p75 = por %p73, %p74
      %p77 = scmp.ne.s32.totalorder %s62, %s76
      %p78 = scmp.eq.s32.totalorder %s31, 0
      %p79 = por %p77, %p78
      %s81 = sadd.s32 %s80, 1
      %p84 = scmp.eq.s32.totalorder %s25, 1
      %p85 = scmp.ne.s32.totalorder %s80, %s82
      %p86 = scmp.eq.s32.totalorder %s25, 0
      %p87 = por %p85, %p86
      %p88 = scmp.ne.s32.totalorder %s80, %s82
      %p89 = scmp.eq.s32.totalorder %s30, 1
      %p90 = por %p88, %p89
      %p91 = scmp.ne.s32.totalorder %s82, %s83
      %p92 = scmp.eq.s32.totalorder %s30, 0
      %p93 = por %p91, %p92
      %p94 = scmp.ne.s32.totalorder %s82, %s83
      %p95 = scmp.eq.s32.totalorder %s31, 1
      %p96 = por %p94, %p95
      %p98 = scmp.ne.s32.totalorder %s83, %s97
      %p99 = scmp.eq.s32.totalorder %s31, 0
      %p100 = por %p98, %p99
      %s102 = sadd.s32 %s101, 1
      %p105 = scmp.eq.s32.totalorder %s25, 1
      %p106 = scmp.ne.s32.totalorder %s101, %s103
      %p107 = scmp.eq.s32.totalorder %s25, 0
      %p108 = por %p106, %p107
      %p109 = scmp.ne.s32.totalorder %s101, %s103
      %p110 = scmp.eq.s32.totalorder %s30, 1
      %p111 = por %p109, %p110
      %p112 = scmp.ne.s32.totalorder %s103, %s104
      %p113 = scmp.eq.s32.totalorder %s30, 0
      %p114 = por %p112, %p113
      %p115 = scmp.ne.s32.totalorder %s103, %s104
      %p116 = scmp.eq.s32.totalorder %s31, 1
      %p117 = por %p115, %p116
      %p119 = scmp.ne.s32.totalorder %s104, %s118
      %p120 = scmp.eq.s32.totalorder %s31, 0
      %p121 = por %p119, %p120
      %s123 = sadd.s32 %s122, 1
      %p126 = scmp.eq.s32.totalorder %s25, 1
      %p127 = scmp.ne.s32.totalorder %s122, %s124
      %p128 = scmp.eq.s32.totalorder %s25, 0
      %p129 = por %p127, %p128
      %p130 = scmp.ne.s32.totalorder %s122, %s124
      %p131 = scmp.eq.s32.totalorder %s30, 1
      %p132 = por %p130, %p131
      %p133 = scmp.ne.s32.totalorder %s124, %s125
      %p134 = scmp.eq.s32.totalorder %s30, 0
      %p135 = por %p133, %p134
      %p136 = scmp.ne.s32.totalorder %s124, %s125
      %p137 = scmp.eq.s32.totalorder %s31, 1
      %p138 = por %p136, %p137
      %p140 = scmp.ne.s32.totalorder %s125, %s139
      %p141 = scmp.eq.s32.totalorder %s31, 0
      %p142 = por %p140, %p141
      %s144 = sadd.s32 %s143, 1
      %p147 = scmp.eq.s32.totalorder %s25, 1
      %p148 = scmp.ne.s32.totalorder %s143, %s145
      %p149 = scmp.eq.s32.totalorder %s25, 0
      %p150 = por %p148, %p149
      %p151 = scmp.ne.s32.totalorder %s143, %s145
      %p152 = scmp.eq.s32.totalorder %s30, 1
      %p153 = por %p151, %p152
      %p154 = scmp.ne.s32.totalorder %s145, %s146
      %p155 = scmp.eq.s32.totalorder %s30, 0
      %p156 = por %p154, %p155
      %p157 = scmp.ne.s32.totalorder %s145, %s146
      %p158 = scmp.eq.s32.totalorder %s31, 1
      %p159 = por %p157, %p158
      %p161 = scmp.ne.s32.totalorder %s146, %s160
      %p162 = scmp.eq.s32.totalorder %s31, 0
      %p163 = por %p161, %p162
      %s165 = sadd.s32 %s164, 1
      %p168 = scmp.eq.s32.totalorder %s25, 1
      %p169 = scmp.ne.s32.totalorder %s164, %s166
      %p170 = scmp.eq.s32.totalorder %s25, 0
      %p171 = por %p169, %p170
      %p172 = scmp.ne.s32.totalorder %s164, %s166
      %p173 = scmp.eq.s32.totalorder %s30, 1
      %p174 = por %p172, %p173
      %p175 = scmp.ne.s32.totalorder %s166, %s167
      %p176 = scmp.eq.s32.totalorder %s30, 0
      %p177 = por %p175, %p176
      %p178 = scmp.ne.s32.totalorder %s166, %s167
      %p179 = scmp.eq.s32.totalorder %s31, 1
      %p180 = por %p178, %p179
      %p182 = scmp.ne.s32.totalorder %s167, %s181
      %p183 = scmp.eq.s32.totalorder %s31, 0
      %p184 = por %p182, %p183
      %s186 = sadd.s32 %s185, 1
      %p189 = scmp.eq.s32.totalorder %s25, 1
      %p190 = scmp.ne.s32.totalorder %s185, %s187
      %p191 = scmp.eq.s32.totalorder %s25, 0
      %p192 = por %p190, %p191
      %p193 = scmp.ne.s32.totalorder %s185, %s187
      %p194 = scmp.eq.s32.totalorder %s30, 1
      %p195 = por %p193, %p194
      %p196 = scmp.ne.s32.totalorder %s187, %s188
      %p197 = scmp.eq.s32.totalorder %s30, 0
      %p198 = por %p196, %p197
      %p199 = scmp.ne.s32.totalorder %s187, %s188
      %p200 = scmp.eq.s32.totalorder %s31, 1
      %p201 = por %p199, %p200
      %p203 = scmp.ne.s32.totalorder %s188, %s202
      %p204 = scmp.eq.s32.totalorder %s31, 0
      %p205 = por %p203, %p204
      %s207 = sadd.s32 %s206, 1
      %p210 = scmp.eq.s32.totalorder %s25, 1
      %p211 = scmp.ne.s32.totalorder %s206, %s208
      %p212 = scmp.eq.s32.totalorder %s25, 0
      %p213 = por %p211, %p212
      %p214 = scmp.ne.s32.totalorder %s206, %s208
      %p215 = scmp.eq.s32.totalorder %s30, 1
      %p216 = por %p214, %p215
      %p217 = scmp.ne.s32.totalorder %s208, %s209
      %p218 = scmp.eq.s32.totalorder %s30, 0
      %p219 = por %p217, %p218
      %p220 = scmp.ne.s32.totalorder %s208, %s209
      %p221 = scmp.eq.s32.totalorder %s31, 1
      %p222 = por %p220, %p221
      %p224 = scmp.ne.s32.totalorder %s209, %s223
      %p225 = scmp.eq.s32.totalorder %s31, 0
      %p226 = por %p224, %p225
      %s228 = sadd.s32 %s227, 1
      %p231 = scmp.eq.s32.totalorder %s25, 1
      %p232 = scmp.ne.s32.totalorder %s227, %s229
      %p233 = scmp.eq.s32.totalorder %s25, 0
      %p234 = por %p232, %p233
      %p235 = scmp.ne.s32.totalorder %s227, %s229
      %p236 = scmp.eq.s32.totalorder %s30, 1
      %p237 = por %p235, %p236
      %p238 = scmp.ne.s32.totalorder %s229, %s230
      %p239 = scmp.eq.s32.totalorder %s30, 0
      %p240 = por %p238, %p239
      %p241 = scmp.ne.s32.totalorder %s229, %s230
      %p242 = scmp.eq.s32.totalorder %s31, 1
      %p243 = por %p241, %p242
      %p245 = scmp.ne.s32.totalorder %s230, %s244
      %p246 = scmp.eq.s32.totalorder %s31, 0
      %p247 = por %p245, %p246
      %s249 = sadd.s32 %s248, 1
      %p252 = scmp.eq.s32.totalorder %s25, 1
      %p253 = scmp.ne.s32.totalorder %s248, %s250
      %p254 = scmp.eq.s32.totalorder %s25, 0
      %p255 = por %p253, %p254
      %p256 = scmp.ne.s32.totalorder %s248, %s250
      %p257 = scmp.eq.s32.totalorder %s30, 1
      %p258 = por %p256, %p257
      %p259 = scmp.ne.s32.totalorder %s250, %s251
      %p260 = scmp.eq.s32.totalorder %s30, 0
      %p261 = por %p259, %p260
      %p262 = scmp.ne.s32.totalorder %s250, %s251
      %p263 = scmp.eq.s32.totalorder %s31, 1
      %p264 = por %p262, %p263
      %p266 = scmp.ne.s32.totalorder %s251, %s265
      %p267 = scmp.eq.s32.totalorder %s31, 0
      %p268 = por %p266, %p267
      %s269 = ssub.s32 %s25, %s32
      %p270 = scmp.eq.s32.totalorder %s269, 0
      %s272 = sadd.s32 %s271, 1
      %s273 = scalar_select %p270, %s271, %s272
      %p276 = pneg %p270
      %p277 = scmp.eq.s32.totalorder %s25, 1
      %p278 = por %p276, %p277
      %p279 = scmp.ne.s32.totalorder %s271, %s274
      %p280 = scmp.eq.s32.totalorder %s25, 0
      %p281 = por %p279, %p280
      %p282 = scmp.ne.s32.totalorder %s271, %s274
      %p283 = scmp.eq.s32.totalorder %s30, 1
      %p284 = por %p282, %p283
      %p285 = scmp.ne.s32.totalorder %s274, %s275
      %p286 = scmp.eq.s32.totalorder %s30, 0
      %p287 = por %p285, %p286
      %p288 = scmp.ne.s32.totalorder %s274, %s275
      %p289 = scmp.eq.s32.totalorder %s31, 1
      %p290 = por %p288, %p289
      %p292 = scmp.ne.s32.totalorder %s275, %s291
      %p293 = scmp.eq.s32.totalorder %s31, 0
      %p294 = por %p292, %p293
      %p295 = scmp.le.s32.totalorder 1, %s25
      %p296 = scmp.lt.s32.totalorder %s25, 3
      %p297 = pnand %p295, %p296
      %p298 = pneg %p297
      // Predicated region
      $region9: #{tpu_custom_call.1} parent=5 // pred_check
        _
      $region10: #{tpu_custom_call.1} parent=5 // pred_check_branch
        %300 = sbr.rel (%p297) target = $region12
      $region11: #{tpu_custom_call.1} parent=5 // pred_region
        %s301 = ssub.s32 %s25, 1
        // Predicated region
        $region13: #{tpu_custom_call.1} parent=11 // pred_check
          %p302 = pneg %p72
        $region14: #{tpu_custom_call.1} parent=11 // pred_check_branch
          %304 = sbr.rel (%p302) target = $region16
        $region15: #{tpu_custom_call.1} parent=11 // pred_region
          _
        $region16: #{tpu_custom_call.1} parent=11 // pred_fallthru
          _
        // Predicated region
        $region17: #{tpu_custom_call.1} parent=11 // pred_check
          %p305 = pneg %p93
        $region18: #{tpu_custom_call.1} parent=11 // pred_check_branch
          %307 = sbr.rel (%p305) target = $region20
        $region19: #{tpu_custom_call.1} parent=11 // pred_region
          _
        $region20: #{tpu_custom_call.1} parent=11 // pred_fallthru
          _
        // Predicated region
        $region21: #{tpu_custom_call.1} parent=11 // pred_check
          %p308 = pneg %p114
        $region22: #{tpu_custom_call.1} parent=11 // pred_check_branch
          %310 = sbr.rel (%p308) target = $region24
        $region23: #{tpu_custom_call.1} parent=11 // pred_region
          _
        $region24: #{tpu_custom_call.1} parent=11 // pred_fallthru
          _
        // Predicated region
        $region25: #{tpu_custom_call.1} parent=11 // pred_check
          %p311 = pneg %p135
        $region26: #{tpu_custom_call.1} parent=11 // pred_check_branch
          %313 = sbr.rel (%p311) target = $region28
        $region27: #{tpu_custom_call.1} parent=11 // pred_region
          _
        $region28: #{tpu_custom_call.1} parent=11 // pred_fallthru
          _
        // Predicated region
        $region29: #{tpu_custom_call.1} parent=11 // pred_check
          %p314 = pneg %p156
        $region30: #{tpu_custom_call.1} parent=11 // pred_check_branch
          %316 = sbr.rel (%p314) target = $region32
        $region31: #{tpu_custom_call.1} parent=11 // pred_region
          _
        $region32: #{tpu_custom_call.1} parent=11 // pred_fallthru
          _
        // Predicated region
        $region33: #{tpu_custom_call.1} parent=11 // pred_check
          %p317 = pneg %p177
        $region34: #{tpu_custom_call.1} parent=11 // pred_check_branch
          %319 = sbr.rel (%p317) target = $region36
        $region35: #{tpu_custom_call.1} parent=11 // pred_region
          _
        $region36: #{tpu_custom_call.1} parent=11 // pred_fallthru
          _
        // Predicated region
        $region37: #{tpu_custom_call.1} parent=11 // pred_check
          %p320 = pneg %p198
        $region38: #{tpu_custom_call.1} parent=11 // pred_check_branch
          %322 = sbr.rel (%p320) target = $region40
        $region39: #{tpu_custom_call.1} parent=11 // pred_region
          _
        $region40: #{tpu_custom_call.1} parent=11 // pred_fallthru
          _
        // Predicated region
        $region41: #{tpu_custom_call.1} parent=11 // pred_check
          %p323 = pneg %p219
        $region42: #{tpu_custom_call.1} parent=11 // pred_check_branch
          %325 = sbr.rel (%p323) target = $region44
        $region43: #{tpu_custom_call.1} parent=11 // pred_region
          _
        $region44: #{tpu_custom_call.1} parent=11 // pred_fallthru
          _
        // Predicated region
        $region45: #{tpu_custom_call.1} parent=11 // pred_check
          %p326 = pneg %p240
        $region46: #{tpu_custom_call.1} parent=11 // pred_check_branch
          %328 = sbr.rel (%p326) target = $region48
        $region47: #{tpu_custom_call.1} parent=11 // pred_region
          _
        $region48: #{tpu_custom_call.1} parent=11 // pred_fallthru
          _
        // Predicated region
        $region49: #{tpu_custom_call.1} parent=11 // pred_check
          %p329 = pneg %p261
        $region50: #{tpu_custom_call.1} parent=11 // pred_check_branch
          %331 = sbr.rel (%p329) target = $region52
        $region51: #{tpu_custom_call.1} parent=11 // pred_region
          _
        $region52: #{tpu_custom_call.1} parent=11 // pred_fallthru
          _
      $region12: #{tpu_custom_call.1} parent=5 // pred_fallthru
        _
      %p332 = scmp.lt.s32.totalorder %s25, 2
      // Predicated region
      $region53: #{tpu_custom_call.1} parent=5 // pred_check
        %p333 = pneg %p332
      $region54: #{tpu_custom_call.1} parent=5 // pred_check_branch
        %335 = sbr.rel (%p333) target = $region56
      $region55: #{tpu_custom_call.1} parent=5 // pred_region
        // Predicated region
        $region57: #{tpu_custom_call.1} parent=55 // pred_check
          %p336 = pneg %p45
        $region58: #{tpu_custom_call.1} parent=55 // pred_check_branch
          %338 = sbr.rel (%p336) target = $region60
        $region59: #{tpu_custom_call.1} parent=55 // pred_region
          %s339 = sand.u32 %s35, 1
          %s340 = scalar_lea.sflag [#allocation4], %s339
          %s341 = sand.u32 %s35, 1
          %s342 = smul.addr %s341, 128
          %s343 = scalar_lea.vmem [#allocation3], %s342
          %s344 = smul.u32 2, %s25
          %s346 = ssub.s32 2048, 2048
          %347 = vsyncadd %s340, %s346
          %s348 = smul.addr %s344, 128
          %s349 = scalar_lea.hbm %s0, %s348
          %s350 = sshll.u32 %s343, 4
          %s351 = int_to_ptr.vmem [resolvable:$true] %s350
          %356 = dma.hbm_to_vmem [thread:$0]  %s349, 2048, %s351, %s340, 512, 256, 16
        $region60: #{tpu_custom_call.1} parent=55 // pred_fallthru
          _
      $region56: #{tpu_custom_call.1} parent=5 // pred_fallthru
        _
      %p357 = scmp.le.s32.totalorder 1, %s25
      %p358 = scmp.lt.s32.totalorder %s25, 3
      %p359 = pnand %p357, %p358
      %p360 = pneg %p359
      // Predicated region
      $region61: #{tpu_custom_call.1} parent=5 // pred_check
        _
      $region62: #{tpu_custom_call.1} parent=5 // pred_check_branch
        %362 = sbr.rel (%p359) target = $region64
      $region63: #{tpu_custom_call.1} parent=5 // pred_region
        %s363 = ssub.s32 %s25, 1
        %s364 = sand.u32 %s38, 1
        %s365 = scalar_lea.sflag [#allocation4], %s364
        %s366 = sand.u32 %s38, 1
        %s367 = smul.addr %s366, 128
        %s368 = scalar_lea.vmem [#allocation3], %s367
        // Predicated region
        $region65: #{tpu_custom_call.1} parent=63 // pred_check
          %p369 = pneg %p51
        $region66: #{tpu_custom_call.1} parent=63 // pred_check_branch
          %371 = sbr.rel (%p369) target = $region68
        $region67: #{tpu_custom_call.1} parent=63 // pred_region
          %372 = dma.done %s365, 2048
        $region68: #{tpu_custom_call.1} parent=63 // pred_fallthru
          _
        %s373 = sand.u32 %s38, 1
        %s374 = scalar_lea.sflag [#allocation4], %s373
        %s375 = sand.u32 %s38, 1
        %s376 = smul.addr %s375, 128
        %s377 = scalar_lea.vmem [#allocation3], %s376
        %p378 = pneg %p51
        %p379 = pneg %p48
        %p380 = pneg %p72
        %p381 = pneg %p69
        %p382 = pneg %p93
        %p383 = pneg %p90
        %p384 = pneg %p114
        %p385 = pneg %p111
        %p386 = pneg %p135
        %p387 = pneg %p132
        %p388 = pneg %p156
        %p389 = pneg %p153
        %p390 = pneg %p177
        %p391 = pneg %p174
        %p392 = pneg %p198
        %p393 = pneg %p195
        %p394 = pneg %p219
        %p395 = pneg %p216
        %p396 = pneg %p240
        %p397 = pneg %p237
        %p398 = pneg %p261
        %p399 = pneg %p258
        %p400 = pneg %p287
        %p401 = pneg %p284
        %s402 = sand.u32 %s274, 1
        %s403 = scalar_lea.sflag [#allocation5], %s402
        %s404 = sand.u32 %s274, 1
        %s405 = smul.addr %s404, 128
        %s406 = scalar_lea.vmem [#allocation6], %s405
        %s407 = smul.u32 2, %s30
        %s408 = smul.u32 2, %s30
        %v409 = vld [vmem:[%s368] sm:$0xff]
        %v410 = vld [vmem:[%s368 + $0x8] sm:$0xff]
        %v411 = vld [vmem:[%s368 + $0x10] sm:$0xff]
        %v412 = vld [vmem:[%s368 + $0x18] sm:$0xff]
        %v413 = vld [vmem:[%s368 + $0x20] sm:$0xff]
        %v414 = vld [vmem:[%s368 + $0x28] sm:$0xff]
        %v415 = vld [vmem:[%s368 + $0x30] sm:$0xff]
        %v416 = vld [vmem:[%s368 + $0x38] sm:$0xff]
        %v417 = vld [vmem:[%s368 + $0x40] sm:$0xff]
        %v418 = vld [vmem:[%s368 + $0x48] sm:$0xff]
        %v419 = vld [vmem:[%s368 + $0x50] sm:$0xff]
        %v420 = vld [vmem:[%s368 + $0x58] sm:$0xff]
        %v421 = vld [vmem:[%s368 + $0x60] sm:$0xff]
        %v422 = vld [vmem:[%s368 + $0x68] sm:$0xff]
        %v423 = vld [vmem:[%s368 + $0x70] sm:$0xff]
        %v424 = vld [vmem:[%s368 + $0x78] sm:$0xff]
        %v425 = vld [vmem:[%s1] sm:$0xff]
        %v426 = vld [vmem:[%s1 + $0x8] sm:$0xff]
        %v427 = vld [vmem:[%s1 + $0x10] sm:$0xff]
        %v428 = vld [vmem:[%s2] sm:$0xff]
        %v429 = vld [vmem:[%s2 + $0x8] sm:$0xff]
        %v430 = vld [vmem:[%s2 + $0x10] sm:$0xff]
        %432 = vset.pattern.permute.xlu0 0
        %433 = vperm.xlu0 %432, %v428
        %v434 = vpop.permute.xlu0 %433
        %437 = vset.pattern.permute.xlu0 0
        %438 = vperm.xlu0 %437, %v429
        %v439 = vpop.permute.xlu0 %438
        %442 = vset.pattern.permute.xlu0 0
        %443 = vperm.xlu0 %442, %v430
        %v444 = vpop.permute.xlu0 %443
        %vm446 = vcmask 523264
        %v448 = vsel %vm446, %v425, 0
        %v451 = vsel %vm446, %v426, 0
        %v454 = vsel %vm446, %v427, 0
        %456 = vmatprep.subr.mxu0 %v410
        %457 = vmatpush1.msra.mxu0 %v409
        %458 = vmatprep.subr.mxu0 %v412
        %459 = vmatpush1.msra.mxu0 %v411
        %460 = vmatprep.subr.mxu0 %v414
        %461 = vmatpush1.msra.mxu0 %v413
        %462 = vmatprep.subr.mxu0 %v416
        %463 = vmatpush1.msra.mxu0 %v415
        %464 = vmatprep.subr.mxu0 %v418
        %465 = vmatpush1.msra.mxu0 %v417
        %466 = vmatprep.subr.mxu0 %v420
        %467 = vmatpush1.msra.mxu0 %v419
        %468 = vmatprep.subr.mxu0 %v422
        %469 = vmatpush1.msra.mxu0 %v421
        %470 = vmatprep.subr.mxu0 %v424
        %471 = vmatpush1.msra.mxu0 %v423
        %472 = vmatprep.subr.mxu0 0.0
        %473 = vmatpush1.msra.mxu0 0.0
        %474 = vmatprep.subr.mxu0 0.0
        %475 = vmatpush1.msra.mxu0 0.0
        %476 = vmatprep.subr.mxu0 0.0
        %477 = vmatpush1.msra.mxu0 0.0
        %478 = vmatprep.subr.mxu0 0.0
        %479 = vmatpush1.msra.mxu0 0.0
        %480 = vmatprep.subr.mxu0 0.0
        %481 = vmatpush1.msra.mxu0 0.0
        %482 = vmatprep.subr.mxu0 0.0
        %483 = vmatpush1.msra.mxu0 0.0
        %484 = vmatprep.subr.mxu0 0.0
        %485 = vmatpush1.msra.mxu0 0.0
        %486 = vmatprep.subr.mxu0 0.0
        %487 = vmatpush1.msra.mxu0 0.0
        %488 = vmatprep.subr.mxu0 0.0
        %489 = vmatpush1.msra.mxu0 0.0
        %490 = vmatprep.subr.mxu0 0.0
        %491 = vmatpush1.msra.mxu0 0.0
        %492 = vmatprep.subr.mxu0 0.0
        %493 = vmatpush1.msra.mxu0 0.0
        %494 = vmatprep.subr.mxu0 0.0
        %495 = vmatpush1.msra.mxu0 0.0
        %496 = vmatprep.subr.mxu0 0.0
        %497 = vmatpush1.msra.mxu0 0.0
        %498 = vmatprep.subr.mxu0 0.0
        %499 = vmatpush1.msra.mxu0 0.0
        %500 = vmatprep.subr.mxu0 0.0
        %501 = vmatpush1.msra.mxu0 0.0
        %502 = vmatprep.subr.mxu0 0.0
        %503 = vmatpush1.msra.mxu0 0.0
        %504 = vmatprep.subr.mxu0 0.0
        %505 = vmatpush1.msra.mxu0 0.0
        %506 = vmatprep.subr.mxu0 0.0
        %507 = vmatpush1.msra.mxu0 0.0
        %508 = vmatprep.subr.mxu0 0.0
        %509 = vmatpush1.msra.mxu0 0.0
        %510 = vmatprep.subr.mxu0 0.0
        %511 = vmatpush1.msra.mxu0 0.0
        %512 = vmatprep.subr.mxu0 0.0
        %513 = vmatpush1.msra.mxu0 0.0
        %514 = vmatprep.subr.mxu0 0.0
        %515 = vmatpush1.msra.mxu0 0.0
        %516 = vmatprep.subr.mxu0 0.0
        %517 = vmatpush1.msra.mxu0 0.0
        %518 = vmatprep.subr.mxu0 0.0
        %519 = vmatpush1.msra.mxu0 0.0
        %520 = vmatprep.mubr.f32.mxu0 0.0
        %521 = vmatmul.mubr.f32.gmra.mrb[0].mxu0 %v448
        %v522 = vpop.f32.mrb[0].mxu0
        %v523 = vadd.f32 %v434, %v522
        %v524 = vpop.f32.mrb[0].mxu0
        %v525 = vadd.f32 %v434, %v524
        %526 = vmatprep.mubr.f32.mxu0 0.0
        %527 = vmatmul.mubr.f32.gmra.mrb[0].mxu0 %v451
        %v528 = vpop.f32.mrb[0].mxu0
        %v529 = vadd.f32 %v439, %v528
        %v530 = vpop.f32.mrb[0].mxu0
        %v531 = vadd.f32 %v439, %v530
        %532 = vmatprep.mubr.f32.mxu0 0.0
        %533 = vmatmul.mubr.f32.gmra.mrb[0].mxu0 %v454
        %v534 = vpop.f32.mrb[0].mxu0
        %v535 = vadd.f32 %v444, %v534
        %v536 = vpop.f32.mrb[0].mxu0
        %v537 = vadd.f32 %v444, %v536
        %538 = vdwg.mxu0
        %v539 = vmax.f32 %v523, 0.0
        %v540 = vmax.f32 %v525, 0.0
        %v541 = vmax.f32 %v529, 0.0
        %v542 = vmax.f32 %v531, 0.0
        %v543 = vmax.f32 %v535, 0.0
        %v544 = vmax.f32 %v537, 0.0
        %v545 = vrot.slane %v543, 4
        %v546 = vadd.f32 %v543, %v545
        %v547 = vrot.slane %v546, 2
        %v548 = vadd.f32 %v546, %v547
        %v549 = vrot.slane %v548, 1
        %v550 = vadd.f32 %v548, %v549
        %v551 = vrot.slane %v544, 4
        %v552 = vadd.f32 %v544, %v551
        %v553 = vrot.slane %v552, 2
        %v554 = vadd.f32 %v552, %v553
        %v555 = vrot.slane %v554, 1
        %v556 = vadd.f32 %v554, %v555
        %v557 = vrcp.pop 8.0
        %v558 = vmul.f32 %v550, %v557
        %v559 = vmul.f32 %v556, %v557
        %v560 = vld [vmem:[%s3] sm:$0xff]
        %v561 = vld [vmem:[%s3 + $0x8] sm:$0xff]
        %v562 = vld [vmem:[%s4] sm:$0xff]
        %v563 = vld [vmem:[%s4 + $0x8] sm:$0xff]
        %564 = vmatprep.subr.mxu0 0.0
        %565 = vmatpush1.xpose.msra.mxu0 %v541
        %566 = vmatprep.subr.mxu0 0.0
        %567 = vmatpush1.xpose.msra.mxu0 0.0
        %568 = vmatprep.subr.mxu0 0.0
        %569 = vmatpush1.xpose.msra.mxu0 0.0
        %570 = vmatprep.subr.mxu0 0.0
        %571 = vmatpush1.xpose.msra.mxu0 0.0
        %572 = vmatprep.subr.mxu0 0.0
        %573 = vmatpush1.xpose.msra.mxu0 0.0
        %574 = vmatprep.subr.mxu0 0.0
        %575 = vmatpush1.xpose.msra.mxu0 0.0
        %576 = vmatprep.subr.mxu0 0.0
        %577 = vmatpush1.xpose.msra.mxu0 0.0
        %578 = vmatprep.subr.mxu0 0.0
        %579 = vmatpush1.xpose.msra.mxu0 0.0
        %580 = vmatprep.subr.mxu0 0.0
        %581 = vmatpush1.xpose.msra.mxu0 0.0
        %582 = vmatprep.subr.mxu0 0.0
        %583 = vmatpush1.xpose.msra.mxu0 0.0
        %584 = vmatprep.subr.mxu0 0.0
        %585 = vmatpush1.xpose.msra.mxu0 0.0
        %586 = vmatprep.subr.mxu0 0.0
        %587 = vmatpush1.xpose.msra.mxu0 0.0
        %588 = vmatprep.subr.mxu0 0.0
        %589 = vmatpush1.xpose.msra.mxu0 0.0
        %590 = vmatprep.subr.mxu0 0.0
        %591 = vmatpush1.xpose.msra.mxu0 0.0
        %592 = vmatprep.subr.mxu0 0.0
        %593 = vmatpush1.xpose.msra.mxu0 0.0
        %594 = vmatprep.subr.mxu0 0.0
        %595 = vmatpush1.xpose.msra.mxu0 0.0
        %596 = vmatprep.subr.mxu0 0.0
        %597 = vmatpush1.xpose.msra.mxu0 0.0
        %598 = vmatprep.subr.mxu0 0.0
        %599 = vmatpush1.xpose.msra.mxu0 0.0
        %600 = vmatprep.subr.mxu0 0.0
        %601 = vmatpush1.xpose.msra.mxu0 0.0
        %602 = vmatprep.subr.mxu0 0.0
        %603 = vmatpush1.xpose.msra.mxu0 0.0
        %604 = vmatprep.subr.mxu0 0.0
        %605 = vmatpush1.xpose.msra.mxu0 0.0
        %606 = vmatprep.subr.mxu0 0.0
        %607 = vmatpush1.xpose.msra.mxu0 0.0
        %608 = vmatprep.subr.mxu0 0.0
        %609 = vmatpush1.xpose.msra.mxu0 0.0
        %610 = vmatprep.subr.mxu0 0.0
        %611 = vmatpush1.xpose.msra.mxu0 0.0
        %612 = vmatprep.subr.mxu0 0.0
        %613 = vmatpush1.xpose.msra.mxu0 0.0
        %614 = vmatprep.subr.mxu0 0.0
        %615 = vmatpush1.xpose.msra.mxu0 0.0
        %616 = vmatprep.subr.mxu0 0.0
        %617 = vmatpush1.xpose.msra.mxu0 0.0
        %618 = vmatprep.subr.mxu0 0.0
        %619 = vmatpush1.xpose.msra.mxu0 0.0
        %620 = vmatprep.subr.mxu0 0.0
        %621 = vmatpush1.xpose.msra.mxu0 0.0
        %622 = vmatprep.subr.mxu0 0.0
        %623 = vmatpush1.xpose.msra.mxu0 0.0
        %624 = vmatprep.subr.mxu0 0.0
        %625 = vmatpush1.xpose.msra.mxu0 0.0
        %626 = vmatprep.subr.mxu0 0.0
        %627 = vmatpush1.xpose.msra.mxu0 0.0
        %628 = vmatprep.mubr.f32.mxu0 0.0
        %629 = vmatmul.mubr.f32.gmra.mrb[0].mxu0 %v560
        %v630 = vpop.f32.mrb[0].mxu0
        %v631 = vadd.f32 0.0, %v630
        %v632 = vpop.f32.mrb[0].mxu0
        %633 = vmatprep.mubr.f32.mxu0 0.0
        %634 = vmatmul.mubr.f32.gmra.mrb[0].mxu0 %v561
        %v635 = vpop.f32.mrb[0].mxu0
        %v636 = vadd.f32 0.0, %v635
        %v637 = vpop.f32.mrb[0].mxu0
        %638 = vdwg.mxu0
        %639 = vmatprep.subr.mxu0 0.0
        %640 = vmatpush1.xpose.msra.mxu0 %v539
        %641 = vmatprep.subr.mxu0 0.0
        %642 = vmatpush1.xpose.msra.mxu0 0.0
        %643 = vmatprep.subr.mxu0 0.0
        %644 = vmatpush1.xpose.msra.mxu0 0.0
        %645 = vmatprep.subr.mxu0 0.0
        %646 = vmatpush1.xpose.msra.mxu0 0.0
        %647 = vmatprep.subr.mxu0 0.0
        %648 = vmatpush1.xpose.msra.mxu0 0.0
        %649 = vmatprep.subr.mxu0 0.0
        %650 = vmatpush1.xpose.msra.mxu0 0.0
        %651 = vmatprep.subr.mxu0 0.0
        %652 = vmatpush1.xpose.msra.mxu0 0.0
        %653 = vmatprep.subr.mxu0 0.0
        %654 = vmatpush1.xpose.msra.mxu0 0.0
        %655 = vmatprep.subr.mxu0 0.0
        %656 = vmatpush1.xpose.msra.mxu0 0.0
        %657 = vmatprep.subr.mxu0 0.0
        %658 = vmatpush1.xpose.msra.mxu0 0.0
        %659 = vmatprep.subr.mxu0 0.0
        %660 = vmatpush1.xpose.msra.mxu0 0.0
        %661 = vmatprep.subr.mxu0 0.0
        %662 = vmatpush1.xpose.msra.mxu0 0.0
        %663 = vmatprep.subr.mxu0 0.0
        %664 = vmatpush1.xpose.msra.mxu0 0.0
        %665 = vmatprep.subr.mxu0 0.0
        %666 = vmatpush1.xpose.msra.mxu0 0.0
        %667 = vmatprep.subr.mxu0 0.0
        %668 = vmatpush1.xpose.msra.mxu0 0.0
        %669 = vmatprep.subr.mxu0 0.0
        %670 = vmatpush1.xpose.msra.mxu0 0.0
        %671 = vmatprep.subr.mxu0 0.0
        %672 = vmatpush1.xpose.msra.mxu0 0.0
        %673 = vmatprep.subr.mxu0 0.0
        %674 = vmatpush1.xpose.msra.mxu0 0.0
        %675 = vmatprep.subr.mxu0 0.0
        %676 = vmatpush1.xpose.msra.mxu0 0.0
        %677 = vmatprep.subr.mxu0 0.0
        %678 = vmatpush1.xpose.msra.mxu0 0.0
        %679 = vmatprep.subr.mxu0 0.0
        %680 = vmatpush1.xpose.msra.mxu0 0.0
        %681 = vmatprep.subr.mxu0 0.0
        %682 = vmatpush1.xpose.msra.mxu0 0.0
        %683 = vmatprep.subr.mxu0 0.0
        %684 = vmatpush1.xpose.msra.mxu0 0.0
        %685 = vmatprep.subr.mxu0 0.0
        %686 = vmatpush1.xpose.msra.mxu0 0.0
        %687 = vmatprep.subr.mxu0 0.0
        %688 = vmatpush1.xpose.msra.mxu0 0.0
        %689 = vmatprep.subr.mxu0 0.0
        %690 = vmatpush1.xpose.msra.mxu0 0.0
        %691 = vmatprep.subr.mxu0 0.0
        %692 = vmatpush1.xpose.msra.mxu0 0.0
        %693 = vmatprep.subr.mxu0 0.0
        %694 = vmatpush1.xpose.msra.mxu0 0.0
        %695 = vmatprep.subr.mxu0 0.0
        %696 = vmatpush1.xpose.msra.mxu0 0.0
        %697 = vmatprep.subr.mxu0 0.0
        %698 = vmatpush1.xpose.msra.mxu0 0.0
        %699 = vmatprep.subr.mxu0 0.0
        %700 = vmatpush1.xpose.msra.mxu0 0.0
        %701 = vmatprep.subr.mxu0 0.0
        %702 = vmatpush1.xpose.msra.mxu0 0.0
        %703 = vmatprep.mubr.f32.mxu0 0.0
        %704 = vmatmul.mubr.f32.gmra.mrb[0].mxu0 %v562
        %v705 = vpop.f32.mrb[0].mxu0
        %v706 = vadd.f32 0.0, %v705
        %v707 = vpop.f32.mrb[0].mxu0
        %708 = vmatprep.mubr.f32.mxu0 0.0
        %709 = vmatmul.mubr.f32.gmra.mrb[0].mxu0 %v563
        %v710 = vpop.f32.mrb[0].mxu0
        %v711 = vadd.f32 0.0, %v710
        %v712 = vpop.f32.mrb[0].mxu0
        %713 = vdwg.mxu0
        %716 = vrot.lane.b32.xlu0 %v706, 8
        %v717 = vpop.permute.xlu0 %716
        %718 = vrot.lane.b32.xlu0 %v711, 8
        %v719 = vpop.permute.xlu0 %718
        %vm722 = vcmask 64512
        %v723 = vsel %vm722, %v631, %v717
        %v724 = vsel %vm722, %v636, %v719
        %vm725 = vcmask 130048
        %v727 = vsel %vm725, %v723, 0
        %v730 = vsel %vm725, %v724, 0
        %732 = vmatprep.subr.mxu0 0.0
        %733 = vmatpush1.msra.mxu0 %v539
        %734 = vmatprep.subr.mxu0 0.0
        %735 = vmatpush1.msra.mxu0 %v541
        %736 = vmatprep.subr.mxu0 0.0
        %737 = vmatpush1.msra.mxu0 0.0
        %738 = vmatprep.subr.mxu0 0.0
        %739 = vmatpush1.msra.mxu0 0.0
        %740 = vmatprep.subr.mxu0 0.0
        %741 = vmatpush1.msra.mxu0 0.0
        %742 = vmatprep.subr.mxu0 0.0
        %743 = vmatpush1.msra.mxu0 0.0
        %744 = vmatprep.subr.mxu0 0.0
        %745 = vmatpush1.msra.mxu0 0.0
        %746 = vmatprep.subr.mxu0 0.0
        %747 = vmatpush1.msra.mxu0 0.0
        %748 = vmatprep.subr.mxu0 0.0
        %749 = vmatpush1.msra.mxu0 0.0
        %750 = vmatprep.subr.mxu0 0.0
        %751 = vmatpush1.msra.mxu0 0.0
        %752 = vmatprep.subr.mxu0 0.0
        %753 = vmatpush1.msra.mxu0 0.0
        %754 = vmatprep.subr.mxu0 0.0
        %755 = vmatpush1.msra.mxu0 0.0
        %756 = vmatprep.subr.mxu0 0.0
        %757 = vmatpush1.msra.mxu0 0.0
        %758 = vmatprep.subr.mxu0 0.0
        %759 = vmatpush1.msra.mxu0 0.0
        %760 = vmatprep.subr.mxu0 0.0
        %761 = vmatpush1.msra.mxu0 0.0
        %762 = vmatprep.subr.mxu0 0.0
        %763 = vmatpush1.msra.mxu0 0.0
        %764 = vmatprep.subr.mxu0 0.0
        %765 = vmatpush1.msra.mxu0 0.0
        %766 = vmatprep.subr.mxu0 0.0
        %767 = vmatpush1.msra.mxu0 0.0
        %768 = vmatprep.subr.mxu0 0.0
        %769 = vmatpush1.msra.mxu0 0.0
        %770 = vmatprep.subr.mxu0 0.0
        %771 = vmatpush1.msra.mxu0 0.0
        %772 = vmatprep.subr.mxu0 0.0
        %773 = vmatpush1.msra.mxu0 0.0
        %774 = vmatprep.subr.mxu0 0.0
        %775 = vmatpush1.msra.mxu0 0.0
        %776 = vmatprep.subr.mxu0 0.0
        %777 = vmatpush1.msra.mxu0 0.0
        %778 = vmatprep.subr.mxu0 0.0
        %779 = vmatpush1.msra.mxu0 0.0
        %780 = vmatprep.subr.mxu0 0.0
        %781 = vmatpush1.msra.mxu0 0.0
        %782 = vmatprep.subr.mxu0 0.0
        %783 = vmatpush1.msra.mxu0 0.0
        %784 = vmatprep.subr.mxu0 0.0
        %785 = vmatpush1.msra.mxu0 0.0
        %786 = vmatprep.subr.mxu0 0.0
        %787 = vmatpush1.msra.mxu0 0.0
        %788 = vmatprep.subr.mxu0 0.0
        %789 = vmatpush1.msra.mxu0 0.0
        %790 = vmatprep.subr.mxu0 0.0
        %791 = vmatpush1.msra.mxu0 0.0
        %792 = vmatprep.subr.mxu0 0.0
        %793 = vmatpush1.msra.mxu0 0.0
        %794 = vmatprep.subr.mxu0 0.0
        %795 = vmatpush1.msra.mxu0 0.0
        %796 = vmatprep.mubr.f32.mxu0 0.0
        %797 = vmatmul.mubr.f32.gmra.mrb[0].mxu0 %v727
        %v798 = vpop.f32.mrb[0].mxu0
        %v799 = vadd.f32 0.0, %v798
        %v800 = vpop.f32.mrb[0].mxu0
        %801 = vmatprep.mubr.f32.mxu0 0.0
        %802 = vmatmul.mubr.f32.gmra.mrb[0].mxu0 %v730
        %v803 = vpop.f32.mrb[0].mxu0
        %v804 = vadd.f32 0.0, %v803
        %v805 = vpop.f32.mrb[0].mxu0
        %806 = vdwg.mxu0
        %807 = vmatprep.subr.mxu0 0.0
        %808 = vmatpush1.xpose.msra.mxu0 %v542
        %809 = vmatprep.subr.mxu0 0.0
        %810 = vmatpush1.xpose.msra.mxu0 0.0
        %811 = vmatprep.subr.mxu0 0.0
        %812 = vmatpush1.xpose.msra.mxu0 0.0
        %813 = vmatprep.subr.mxu0 0.0
        %814 = vmatpush1.xpose.msra.mxu0 0.0
        %815 = vmatprep.subr.mxu0 0.0
        %816 = vmatpush1.xpose.msra.mxu0 0.0
        %817 = vmatprep.subr.mxu0 0.0
        %818 = vmatpush1.xpose.msra.mxu0 0.0
        %819 = vmatprep.subr.mxu0 0.0
        %820 = vmatpush1.xpose.msra.mxu0 0.0
        %821 = vmatprep.subr.mxu0 0.0
        %822 = vmatpush1.xpose.msra.mxu0 0.0
        %823 = vmatprep.subr.mxu0 0.0
        %824 = vmatpush1.xpose.msra.mxu0 0.0
        %825 = vmatprep.subr.mxu0 0.0
        %826 = vmatpush1.xpose.msra.mxu0 0.0
        %827 = vmatprep.subr.mxu0 0.0
        %828 = vmatpush1.xpose.msra.mxu0 0.0
        %829 = vmatprep.subr.mxu0 0.0
        %830 = vmatpush1.xpose.msra.mxu0 0.0
        %831 = vmatprep.subr.mxu0 0.0
        %832 = vmatpush1.xpose.msra.mxu0 0.0
        %833 = vmatprep.subr.mxu0 0.0
        %834 = vmatpush1.xpose.msra.mxu0 0.0
        %835 = vmatprep.subr.mxu0 0.0
        %836 = vmatpush1.xpose.msra.mxu0 0.0
        %837 = vmatprep.subr.mxu0 0.0
        %838 = vmatpush1.xpose.msra.mxu0 0.0
        %839 = vmatprep.subr.mxu0 0.0
        %840 = vmatpush1.xpose.msra.mxu0 0.0
        %841 = vmatprep.subr.mxu0 0.0
        %842 = vmatpush1.xpose.msra.mxu0 0.0
        %843 = vmatprep.subr.mxu0 0.0
        %844 = vmatpush1.xpose.msra.mxu0 0.0
        %845 = vmatprep.subr.mxu0 0.0
        %846 = vmatpush1.xpose.msra.mxu0 0.0
        %847 = vmatprep.subr.mxu0 0.0
        %848 = vmatpush1.xpose.msra.mxu0 0.0
        %849 = vmatprep.subr.mxu0 0.0
        %850 = vmatpush1.xpose.msra.mxu0 0.0
        %851 = vmatprep.subr.mxu0 0.0
        %852 = vmatpush1.xpose.msra.mxu0 0.0
        %853 = vmatprep.subr.mxu0 0.0
        %854 = vmatpush1.xpose.msra.mxu0 0.0
        %855 = vmatprep.subr.mxu0 0.0
        %856 = vmatpush1.xpose.msra.mxu0 0.0
        %857 = vmatprep.subr.mxu0 0.0
        %858 = vmatpush1.xpose.msra.mxu0 0.0
        %859 = vmatprep.subr.mxu0 0.0
        %860 = vmatpush1.xpose.msra.mxu0 0.0
        %861 = vmatprep.subr.mxu0 0.0
        %862 = vmatpush1.xpose.msra.mxu0 0.0
        %863 = vmatprep.subr.mxu0 0.0
        %864 = vmatpush1.xpose.msra.mxu0 0.0
        %865 = vmatprep.subr.mxu0 0.0
        %866 = vmatpush1.xpose.msra.mxu0 0.0
        %867 = vmatprep.subr.mxu0 0.0
        %868 = vmatpush1.xpose.msra.mxu0 0.0
        %869 = vmatprep.subr.mxu0 0.0
        %870 = vmatpush1.xpose.msra.mxu0 0.0
        %871 = vmatprep.mubr.f32.mxu0 0.0
        %872 = vmatmul.mubr.f32.gmra.mrb[0].mxu0 %v560
        %v873 = vpop.f32.mrb[0].mxu0
        %v874 = vadd.f32 0.0, %v873
        %v875 = vpop.f32.mrb[0].mxu0
        %876 = vmatprep.mubr.f32.mxu0 0.0
        %877 = vmatmul.mubr.f32.gmra.mrb[0].mxu0 %v561
        %v878 = vpop.f32.mrb[0].mxu0
        %v879 = vadd.f32 0.0, %v878
        %v880 = vpop.f32.mrb[0].mxu0
        %881 = vdwg.mxu0
        %882 = vmatprep.subr.mxu0 0.0
        %883 = vmatpush1.xpose.msra.mxu0 %v540
        %884 = vmatprep.subr.mxu0 0.0
        %885 = vmatpush1.xpose.msra.mxu0 0.0
        %886 = vmatprep.subr.mxu0 0.0
        %887 = vmatpush1.xpose.msra.mxu0 0.0
        %888 = vmatprep.subr.mxu0 0.0
        %889 = vmatpush1.xpose.msra.mxu0 0.0
        %890 = vmatprep.subr.mxu0 0.0
        %891 = vmatpush1.xpose.msra.mxu0 0.0
        %892 = vmatprep.subr.mxu0 0.0
        %893 = vmatpush1.xpose.msra.mxu0 0.0
        %894 = vmatprep.subr.mxu0 0.0
        %895 = vmatpush1.xpose.msra.mxu0 0.0
        %896 = vmatprep.subr.mxu0 0.0
        %897 = vmatpush1.xpose.msra.mxu0 0.0
        %898 = vmatprep.subr.mxu0 0.0
        %899 = vmatpush1.xpose.msra.mxu0 0.0
        %900 = vmatprep.subr.mxu0 0.0
        %901 = vmatpush1.xpose.msra.mxu0 0.0
        %902 = vmatprep.subr.mxu0 0.0
        %903 = vmatpush1.xpose.msra.mxu0 0.0
        %904 = vmatprep.subr.mxu0 0.0
        %905 = vmatpush1.xpose.msra.mxu0 0.0
        %906 = vmatprep.subr.mxu0 0.0
        %907 = vmatpush1.xpose.msra.mxu0 0.0
        %908 = vmatprep.subr.mxu0 0.0
        %909 = vmatpush1.xpose.msra.mxu0 0.0
        %910 = vmatprep.subr.mxu0 0.0
        %911 = vmatpush1.xpose.msra.mxu0 0.0
        %912 = vmatprep.subr.mxu0 0.0
        %913 = vmatpush1.xpose.msra.mxu0 0.0
        %914 = vmatprep.subr.mxu0 0.0
        %915 = vmatpush1.xpose.msra.mxu0 0.0
        %916 = vmatprep.subr.mxu0 0.0
        %917 = vmatpush1.xpose.msra.mxu0 0.0
        %918 = vmatprep.subr.mxu0 0.0
        %919 = vmatpush1.xpose.msra.mxu0 0.0
        %920 = vmatprep.subr.mxu0 0.0
        %921 = vmatpush1.xpose.msra.mxu0 0.0
        %922 = vmatprep.subr.mxu0 0.0
        %923 = vmatpush1.xpose.msra.mxu0 0.0
        %924 = vmatprep.subr.mxu0 0.0
        %925 = vmatpush1.xpose.msra.mxu0 0.0
        %926 = vmatprep.subr.mxu0 0.0
        %927 = vmatpush1.xpose.msra.mxu0 0.0
        %928 = vmatprep.subr.mxu0 0.0
        %929 = vmatpush1.xpose.msra.mxu0 0.0
        %930 = vmatprep.subr.mxu0 0.0
        %931 = vmatpush1.xpose.msra.mxu0 0.0
        %932 = vmatprep.subr.mxu0 0.0
        %933 = vmatpush1.xpose.msra.mxu0 0.0
        %934 = vmatprep.subr.mxu0 0.0
        %935 = vmatpush1.xpose.msra.mxu0 0.0
        %936 = vmatprep.subr.mxu0 0.0
        %937 = vmatpush1.xpose.msra.mxu0 0.0
        %938 = vmatprep.subr.mxu0 0.0
        %939 = vmatpush1.xpose.msra.mxu0 0.0
        %940 = vmatprep.subr.mxu0 0.0
        %941 = vmatpush1.xpose.msra.mxu0 0.0
        %942 = vmatprep.subr.mxu0 0.0
        %943 = vmatpush1.xpose.msra.mxu0 0.0
        %944 = vmatprep.subr.mxu0 0.0
        %945 = vmatpush1.xpose.msra.mxu0 0.0
        %946 = vmatprep.mubr.f32.mxu0 0.0
        %947 = vmatmul.mubr.f32.gmra.mrb[0].mxu0 %v562
        %v948 = vpop.f32.mrb[0].mxu0
        %v949 = vadd.f32 0.0, %v948
        %v950 = vpop.f32.mrb[0].mxu0
        %951 = vmatprep.mubr.f32.mxu0 0.0
        %952 = vmatmul.mubr.f32.gmra.mrb[0].mxu0 %v563
        %v953 = vpop.f32.mrb[0].mxu0
        %v954 = vadd.f32 0.0, %v953
        %v955 = vpop.f32.mrb[0].mxu0
        %956 = vdwg.mxu0
        %959 = vrot.lane.b32.xlu0 %v949, 8
        %v960 = vpop.permute.xlu0 %959
        %961 = vrot.lane.b32.xlu0 %v954, 8
        %v962 = vpop.permute.xlu0 %961
        %v965 = vsel %vm722, %v874, %v960
        %v966 = vsel %vm722, %v879, %v962
        %v968 = vsel %vm725, %v965, 0
        %v971 = vsel %vm725, %v966, 0
        %973 = vmatprep.subr.mxu0 0.0
        %974 = vmatpush1.msra.mxu0 %v540
        %975 = vmatprep.subr.mxu0 0.0
        %976 = vmatpush1.msra.mxu0 %v542
        %977 = vmatprep.subr.mxu0 0.0
        %978 = vmatpush1.msra.mxu0 0.0
        %979 = vmatprep.subr.mxu0 0.0
        %980 = vmatpush1.msra.mxu0 0.0
        %981 = vmatprep.subr.mxu0 0.0
        %982 = vmatpush1.msra.mxu0 0.0
        %983 = vmatprep.subr.mxu0 0.0
        %984 = vmatpush1.msra.mxu0 0.0
        %985 = vmatprep.subr.mxu0 0.0
        %986 = vmatpush1.msra.mxu0 0.0
        %987 = vmatprep.subr.mxu0 0.0
        %988 = vmatpush1.msra.mxu0 0.0
        %989 = vmatprep.subr.mxu0 0.0
        %990 = vmatpush1.msra.mxu0 0.0
        %991 = vmatprep.subr.mxu0 0.0
        %992 = vmatpush1.msra.mxu0 0.0
        %993 = vmatprep.subr.mxu0 0.0
        %994 = vmatpush1.msra.mxu0 0.0
        %995 = vmatprep.subr.mxu0 0.0
        %996 = vmatpush1.msra.mxu0 0.0
        %997 = vmatprep.subr.mxu0 0.0
        %998 = vmatpush1.msra.mxu0 0.0
        %999 = vmatprep.subr.mxu0 0.0
        %1000 = vmatpush1.msra.mxu0 0.0
        %1001 = vmatprep.subr.mxu0 0.0
        %1002 = vmatpush1.msra.mxu0 0.0
        %1003 = vmatprep.subr.mxu0 0.0
        %1004 = vmatpush1.msra.mxu0 0.0
        %1005 = vmatprep.subr.mxu0 0.0
        %1006 = vmatpush1.msra.mxu0 0.0
        %1007 = vmatprep.subr.mxu0 0.0
        %1008 = vmatpush1.msra.mxu0 0.0
        %1009 = vmatprep.subr.mxu0 0.0
        %1010 = vmatpush1.msra.mxu0 0.0
        %1011 = vmatprep.subr.mxu0 0.0
        %1012 = vmatpush1.msra.mxu0 0.0
        %1013 = vmatprep.subr.mxu0 0.0
        %1014 = vmatpush1.msra.mxu0 0.0
        %1015 = vmatprep.subr.mxu0 0.0
        %1016 = vmatpush1.msra.mxu0 0.0
        %1017 = vmatprep.subr.mxu0 0.0
        %1018 = vmatpush1.msra.mxu0 0.0
        %1019 = vmatprep.subr.mxu0 0.0
        %1020 = vmatpush1.msra.mxu0 0.0
        %1021 = vmatprep.subr.mxu0 0.0
        %1022 = vmatpush1.msra.mxu0 0.0
        %1023 = vmatprep.subr.mxu0 0.0
        %1024 = vmatpush1.msra.mxu0 0.0
        %1025 = vmatprep.subr.mxu0 0.0
        %1026 = vmatpush1.msra.mxu0 0.0
        %1027 = vmatprep.subr.mxu0 0.0
        %1028 = vmatpush1.msra.mxu0 0.0
        %1029 = vmatprep.subr.mxu0 0.0
        %1030 = vmatpush1.msra.mxu0 0.0
        %1031 = vmatprep.subr.mxu0 0.0
        %1032 = vmatpush1.msra.mxu0 0.0
        %1033 = vmatprep.subr.mxu0 0.0
        %1034 = vmatpush1.msra.mxu0 0.0
        %1035 = vmatprep.subr.mxu0 0.0
        %1036 = vmatpush1.msra.mxu0 0.0
        %1037 = vmatprep.mubr.f32.mxu0 0.0
        %1038 = vmatmul.mubr.f32.gmra.mrb[0].mxu0 %v968
        %v1039 = vpop.f32.mrb[0].mxu0
        %v1040 = vadd.f32 0.0, %v1039
        %v1041 = vpop.f32.mrb[0].mxu0
        %1042 = vmatprep.mubr.f32.mxu0 0.0
        %1043 = vmatmul.mubr.f32.gmra.mrb[0].mxu0 %v971
        %v1044 = vpop.f32.mrb[0].mxu0
        %v1045 = vadd.f32 0.0, %v1044
        %v1046 = vpop.f32.mrb[0].mxu0
        %1047 = vdwg.mxu0
        %v1048 = vld [vmem:[%s5] sm:$0xff]
        %v1049 = vld [vmem:[%s5 + $0x8] sm:$0xff]
        %1051 = vset.pattern.permute.xlu0 0
        %1052 = vperm.xlu0 %1051, %v1048
        %v1053 = vpop.permute.xlu0 %1052
        %1056 = vset.pattern.permute.xlu0 0
        %1057 = vperm.xlu0 %1056, %v1049
        %v1058 = vpop.permute.xlu0 %1057
        %v1060 = vadd.f32 %v799, %v1053
        %v1061 = vadd.f32 %v1040, %v1053
        %v1062 = vadd.f32 %v804, %v1058
        %v1063 = vadd.f32 %v1045, %v1058
        %v1064 = vmax.f32 %v1060, 0.0
        %v1065 = vmax.f32 %v1061, 0.0
        %v1066 = vmax.f32 %v1062, 0.0
        %v1067 = vmax.f32 %v1063, 0.0
        %v1068 = vld [vmem:[%s7] sm:$0x3]
        %v1069 = vld [vmem:[%s6] sm:$0x3]
        %1071 = vset.pattern.permute.xlu0 0
        %1072 = vperm.xlu0 %1071, %v1069
        %v1073 = vpop.permute.xlu0 %1072
        %v1075 = vmul.f32 %v1073, %v558
        %v1076 = vmul.f32 %v1073, %v559
        %v1078 = vsel %vm725, %v1068, 0
        %1080 = vmatprep.subr.mxu0 %v1065
        %1081 = vmatpush1.msra.mxu0 %v1064
        %1082 = vmatprep.subr.mxu0 %v1067
        %1083 = vmatpush1.msra.mxu0 %v1066
        %1084 = vmatprep.subr.mxu0 0.0
        %1085 = vmatpush1.msra.mxu0 0.0
        %1086 = vmatprep.subr.mxu0 0.0
        %1087 = vmatpush1.msra.mxu0 0.0
        %1088 = vmatprep.subr.mxu0 0.0
        %1089 = vmatpush1.msra.mxu0 0.0
        %1090 = vmatprep.subr.mxu0 0.0
        %1091 = vmatpush1.msra.mxu0 0.0
        %1092 = vmatprep.subr.mxu0 0.0
        %1093 = vmatpush1.msra.mxu0 0.0
        %1094 = vmatprep.subr.mxu0 0.0
        %1095 = vmatpush1.msra.mxu0 0.0
        %1096 = vmatprep.subr.mxu0 0.0
        %1097 = vmatpush1.msra.mxu0 0.0
        %1098 = vmatprep.subr.mxu0 0.0
        %1099 = vmatpush1.msra.mxu0 0.0
        %1100 = vmatprep.subr.mxu0 0.0
        %1101 = vmatpush1.msra.mxu0 0.0
        %1102 = vmatprep.subr.mxu0 0.0
        %1103 = vmatpush1.msra.mxu0 0.0
        %1104 = vmatprep.subr.mxu0 0.0
        %1105 = vmatpush1.msra.mxu0 0.0
        %1106 = vmatprep.subr.mxu0 0.0
        %1107 = vmatpush1.msra.mxu0 0.0
        %1108 = vmatprep.subr.mxu0 0.0
        %1109 = vmatpush1.msra.mxu0 0.0
        %1110 = vmatprep.subr.mxu0 0.0
        %1111 = vmatpush1.msra.mxu0 0.0
        %1112 = vmatprep.subr.mxu0 0.0
        %1113 = vmatpush1.msra.mxu0 0.0
        %1114 = vmatprep.subr.mxu0 0.0
        %1115 = vmatpush1.msra.mxu0 0.0
        %1116 = vmatprep.subr.mxu0 0.0
        %1117 = vmatpush1.msra.mxu0 0.0
        %1118 = vmatprep.subr.mxu0 0.0
        %1119 = vmatpush1.msra.mxu0 0.0
        %1120 = vmatprep.subr.mxu0 0.0
        %1121 = vmatpush1.msra.mxu0 0.0
        %1122 = vmatprep.subr.mxu0 0.0
        %1123 = vmatpush1.msra.mxu0 0.0
        %1124 = vmatprep.subr.mxu0 0.0
        %1125 = vmatpush1.msra.mxu0 0.0
        %1126 = vmatprep.subr.mxu0 0.0
        %1127 = vmatpush1.msra.mxu0 0.0
        %1128 = vmatprep.subr.mxu0 0.0
        %1129 = vmatpush1.msra.mxu0 0.0
        %1130 = vmatprep.subr.mxu0 0.0
        %1131 = vmatpush1.msra.mxu0 0.0
        %1132 = vmatprep.subr.mxu0 0.0
        %1133 = vmatpush1.msra.mxu0 0.0
        %1134 = vmatprep.subr.mxu0 0.0
        %1135 = vmatpush1.msra.mxu0 0.0
        %1136 = vmatprep.subr.mxu0 0.0
        %1137 = vmatpush1.msra.mxu0 0.0
        %1138 = vmatprep.subr.mxu0 0.0
        %1139 = vmatpush1.msra.mxu0 0.0
        %1140 = vmatprep.subr.mxu0 0.0
        %1141 = vmatpush1.msra.mxu0 0.0
        %1142 = vmatprep.subr.mxu0 0.0
        %1143 = vmatpush1.msra.mxu0 0.0
        %1144 = vmatprep.mubr.f32.mxu0 0.0
        %1145 = vmatmul.mubr.f32.gmra.mrb[0].mxu0 %v1078
        %v1146 = vpop.f32.mrb[0].mxu0
        %v1147 = vadd.f32 %v1075, %v1146
        %v1148 = vpop.f32.mrb[0].mxu0
        %v1149 = vadd.f32 %v1076, %v1148
        %1150 = vdwg.mxu0
        %v1151 = vld [vmem:[%s8] sm:$0x3]
        %1153 = vset.pattern.permute.xlu0 0
        %1154 = vperm.xlu0 %1153, %v1151
        %v1155 = vpop.permute.xlu0 %1154
        %v1157 = vadd.f32 %v1147, %v1155
        %v1158 = vadd.f32 %v1149, %v1155
        %v1159 = vmax.f32 %v1157, 0.0
        %v1160 = vmax.f32 %v1158, 0.0
        %v1161 = vld [vmem:[%s9] sm:$0x3]
        %1163 = vset.pattern.permute.xlu0 0
        %1164 = vperm.xlu0 %1163, %v1161
        %v1165 = vpop.permute.xlu0 %1164
        %v1167 = vmul.f32 %v1165, %v1159
        %v1168 = vmul.f32 %v1165, %v1160
        %vm1169 = vcmask 1041408
        %v1170 = vsel %vm1169, %v1167, 0.0
        %v1171 = vrot.slane %v1170, 4
        %v1172 = vadd.f32 %v1170, %v1171
        %v1173 = vrot.slane %v1172, 2
        %v1174 = vadd.f32 %v1172, %v1173
        %v1175 = vrot.slane %v1174, 1
        %v1176 = vadd.f32 %v1174, %v1175
        %v1177 = vsel %vm1169, %v1168, 0.0
        %v1178 = vrot.slane %v1177, 4
        %v1179 = vadd.f32 %v1177, %v1178
        %v1180 = vrot.slane %v1179, 2
        %v1181 = vadd.f32 %v1179, %v1180
        %v1182 = vrot.slane %v1181, 1
        %v1183 = vadd.f32 %v1181, %v1182
        %v1184 = vld [vmem:[#allocation2] sm:$0x1]
        %1186 = vset.pattern.permute.xlu0 0
        %1187 = vperm.xlu0 %1186, %v1184
        %v1188 = vpop.permute.xlu0 %1187
        %v1190 = vlaneseq
        %v1191 = vshrl.u32 %v1190, 7
        %v1192 = vsub.s32 0, %v1191
        %v1193 = vrot.slane %v1188, %v1192
        %v1194 = vadd.f32 %v1176, %v1193
        %v1195 = vadd.f32 %v1183, %v1193
        %v1196 = vxor.u32 %v1194, 2147483648
        %v1197 = vxor.u32 %v1195, 2147483648
        %v1198 = vmul.f32 %v1196, 1.442695
        %v1199 = vpow.pop %v1198
        %v1200 = vmul.f32 %v1197, 1.442695
        %v1201 = vpow.pop %v1200
        %v1202 = vadd.f32 %v1199, 1.0
        %v1203 = vadd.f32 %v1201, 1.0
        %v1204 = vrcp.pop %v1202
        %v1205 = vmul.f32 1.0, %v1204
        %v1206 = vrcp.pop %v1203
        %v1207 = vmul.f32 1.0, %v1206
        %v1208 = vld [vmem:[%s368] sm:$0xff]
        %v1209 = vld [vmem:[%s368 + $0x8] sm:$0xff]
        %v1210 = vld [vmem:[%s368 + $0x10] sm:$0xff]
        %v1211 = vld [vmem:[%s368 + $0x18] sm:$0xff]
        %v1212 = vld [vmem:[%s368 + $0x20] sm:$0xff]
        %v1213 = vld [vmem:[%s368 + $0x28] sm:$0xff]
        %v1214 = vld [vmem:[%s368 + $0x30] sm:$0xff]
        %v1215 = vld [vmem:[%s368 + $0x38] sm:$0xff]
        %v1216 = vld [vmem:[%s368 + $0x40] sm:$0xff]
        %v1217 = vld [vmem:[%s368 + $0x48] sm:$0xff]
        %v1218 = vld [vmem:[%s368 + $0x50] sm:$0xff]
        %v1219 = vld [vmem:[%s368 + $0x58] sm:$0xff]
        %v1220 = vld [vmem:[%s368 + $0x60] sm:$0xff]
        %v1221 = vld [vmem:[%s368 + $0x68] sm:$0xff]
        %v1222 = vld [vmem:[%s368 + $0x70] sm:$0xff]
        %v1223 = vld [vmem:[%s368 + $0x78] sm:$0xff]
        %v1224 = vmul.f32 %v1205, %v1208
        %v1225 = vmul.f32 %v1207, %v1209
        %v1226 = vmul.f32 %v1205, %v1210
        %v1227 = vmul.f32 %v1207, %v1211
        %v1228 = vmul.f32 %v1205, %v1212
        %v1229 = vmul.f32 %v1207, %v1213
        %v1230 = vmul.f32 %v1205, %v1214
        %v1231 = vmul.f32 %v1207, %v1215
        %v1232 = vmul.f32 %v1205, %v1216
        %v1233 = vmul.f32 %v1207, %v1217
        %v1234 = vmul.f32 %v1205, %v1218
        %v1235 = vmul.f32 %v1207, %v1219
        %v1236 = vmul.f32 %v1205, %v1220
        %v1237 = vmul.f32 %v1207, %v1221
        %v1238 = vmul.f32 %v1205, %v1222
        %v1239 = vmul.f32 %v1207, %v1223
        %1240 = vst [vmem:[%s406] sm:$0xff] %v1224
        %1241 = vst [vmem:[%s406 + $0x8] sm:$0xff] %v1225
        %1242 = vst [vmem:[%s406 + $0x10] sm:$0xff] %v1226
        %1243 = vst [vmem:[%s406 + $0x18] sm:$0xff] %v1227
        %1244 = vst [vmem:[%s406 + $0x20] sm:$0xff] %v1228
        %1245 = vst [vmem:[%s406 + $0x28] sm:$0xff] %v1229
        %1246 = vst [vmem:[%s406 + $0x30] sm:$0xff] %v1230
        %1247 = vst [vmem:[%s406 + $0x38] sm:$0xff] %v1231
        %1248 = vst [vmem:[%s406 + $0x40] sm:$0xff] %v1232
        %1249 = vst [vmem:[%s406 + $0x48] sm:$0xff] %v1233
        %1250 = vst [vmem:[%s406 + $0x50] sm:$0xff] %v1234
        %1251 = vst [vmem:[%s406 + $0x58] sm:$0xff] %v1235
        %1252 = vst [vmem:[%s406 + $0x60] sm:$0xff] %v1236
        %1253 = vst [vmem:[%s406 + $0x68] sm:$0xff] %v1237
        %1254 = vst [vmem:[%s406 + $0x70] sm:$0xff] %v1238
        %1255 = vst [vmem:[%s406 + $0x78] sm:$0xff] %v1239
        %s1256 = sand.u32 %s274, 1
        %s1257 = scalar_lea.sflag [#allocation5], %s1256
        %s1258 = sand.u32 %s274, 1
        %s1259 = smul.addr %s1258, 128
        %s1260 = scalar_lea.vmem [#allocation6], %s1259
        // Predicated region
        $region69: #{tpu_custom_call.1} parent=63 // pred_check
          %p1261 = pneg %p284
        $region70: #{tpu_custom_call.1} parent=63 // pred_check_branch
          %1263 = sbr.rel (%p1261) target = $region72
        $region71: #{tpu_custom_call.1} parent=63 // pred_region
          %s1264 = smul.u32 2, %s30
          %s1266 = ssub.s32 2048, 2048
          %1267 = vsyncadd %s1257, %s1266
          %s1268 = smul.addr %s1264, 128
          %s1269 = scalar_lea.hbm %s11, %s1268
          %s1270 = sshll.u32 %s1260, 4
          %s1271 = int_to_ptr.vmem [resolvable:$true] %s1270
          %1276 = dma.vmem_to_hbm [thread:$0]  %s1271, 2048, %s1269, %s1257, 256, 512, 16
        $region72: #{tpu_custom_call.1} parent=63 // pred_fallthru
          _
      $region64: #{tpu_custom_call.1} parent=5 // pred_fallthru
        _
      %p1277 = scmp.le.s32.totalorder 2, %s25
      // Predicated region
      $region73: #{tpu_custom_call.1} parent=5 // pred_check
        %p1278 = pneg %p1277
      $region74: #{tpu_custom_call.1} parent=5 // pred_check_branch
        %1280 = sbr.rel (%p1278) target = $region76
      $region75: #{tpu_custom_call.1} parent=5 // pred_region
        %s1281 = ssub.s32 %s25, 2
        // Predicated region
        $region77: #{tpu_custom_call.1} parent=75 // pred_check
          %p1282 = pneg %p290
        $region78: #{tpu_custom_call.1} parent=75 // pred_check_branch
          %1284 = sbr.rel (%p1282) target = $region80
        $region79: #{tpu_custom_call.1} parent=75 // pred_region
          %s1285 = sand.u32 %s275, 1
          %s1286 = scalar_lea.sflag [#allocation5], %s1285
          %s1287 = sand.u32 %s275, 1
          %s1288 = smul.addr %s1287, 128
          %s1289 = scalar_lea.vmem [#allocation6], %s1288
          %1290 = dma.done %s1286, 2048
        $region80: #{tpu_custom_call.1} parent=75 // pred_fallthru
          _
      $region76: #{tpu_custom_call.1} parent=5 // pred_fallthru
        _
    $region6: #{tpu_custom_call.1} parent=1 // loop_footer
      %s29 = sadd.s32 1, %s25
    $region7: #{tpu_custom_call.1} parent=1 // loop_footer_branch
      %24 = sbr.rel target = $region3
    $region8: #{tpu_custom_call.1} parent=1 // loop_exit
      _
    %1291 = vsyncpa [#allocation4], 1
    %s1292 = scalar_lea.sflag [#allocation4], 1
    %1293 = vsyncpa %s1292, 1
    %1294 = vsyncpa [#allocation5], 1
    %s1295 = scalar_lea.sflag [#allocation5], 1
    %1296 = vsyncpa %s1295, 1

</llo_original>
